<compile_context>
chip_gen: v6e
topology: v6e:2x2x1
jax: 0.10.0
libtpu: 0.0.40
codegen_flags: <defaults>
</compile_context>

<pallas_src>
import functools

import jax
import jax.numpy as jnp
import numpy as np
from jax import lax
from jax.experimental import pallas as pl
from jax.experimental.pallas import tpu as pltpu

# ---- model config (small, consistent with Config) ----
DM = 32            # model dim
DK = 8             # per-head dim
HEAD_NUM = 4       # heads (HEAD_NUM * DK == DM)
INTERMEDIATE = 64  # FFN hidden size
BATCH = 2
SEQ = 8
EPS = 1e-5         # torch.nn.functional.layer_norm default eps


def _whole_tensor_layer_norm(t):
    """Single-pass layer_norm with normalized_shape == t.shape (one mean/var over everything)."""
    inv_n = 1.0 / float(t.size)
    s = jnp.sum(t)
    s2 = jnp.sum(t * t)
    mu = s * inv_n
    var = s2 * inv_n - mu * mu
    return (t - mu) * lax.rsqrt(var + EPS)


def encoder_kernel(x_ref, w_ref, o_ref, *, batch, seq, head_num, dk, dm, inter):
    """Whole encoder block in one kernel invocation (entire working set fits in VMEM/vregs)."""
    x = x_ref[...].astype(jnp.float32)      # (B*L, D)
    w = w_ref[...].astype(jnp.float32)      # (D, 3*H*dk + D + I + I) packed: wq|wk|wv|wo|wu|wd.T

    hd = head_num * dk                      # == dm for this config
    wqkv = w[:, :3 * hd]                    # (D, 3*H*dk)   (1/sqrt(dk) already folded into wq)
    wo = w[:, 3 * hd:3 * hd + dm]           # (H*dk, D)
    wu = w[:, 3 * hd + dm:3 * hd + dm + inter]   # (D, I)
    wdT = w[:, 3 * hd + dm + inter:]        # (D, I) == wd.T

    # ----- fused QKV projection over the full slab: one wide MXU push -----
    qkv = jnp.dot(x, wqkv, preferred_element_type=jnp.float32)   # (B*L, 3*H*dk)

    def split_heads(t):
        # (B*L, H*dk) -> (H*B, L, dk): lane slices per head stacked on a new leading
        # axis, then a layout-preserving leading-dim reshape (16 sublanes -> 2 x 8).
        heads = [t[:, h * dk:(h + 1) * dk] for h in range(head_num)]
        return jnp.stack(heads, axis=0).reshape(head_num * batch, seq, dk)

    q = split_heads(qkv[:, :hd])
    k = split_heads(qkv[:, hd:2 * hd])
    v = split_heads(qkv[:, 2 * hd:3 * hd])

    # ----- batched attention: ONE dot_general for all (head, batch) score blocks -----
    s = lax.dot_general(q, k, (((2,), (2,)), ((0,), (0,))),
                        preferred_element_type=jnp.float32)      # (H*B, L, L)
    s = s - jnp.max(s, axis=-1, keepdims=True)
    p = jnp.exp(s)
    p = p * pl.reciprocal(jnp.sum(p, axis=-1, keepdims=True))     # exact (1e-4 accuracy budget)
    a = lax.dot_general(p, v, (((2,), (1,)), ((0,), (0,))),
                        preferred_element_type=jnp.float32)      # (H*B, L, dk)
    a = a.reshape(head_num, batch * seq, dk)                      # per-head (B*L, dk) slabs

    # ----- output projection accumulated per head (== concat(a_h) @ wo, no lane concat) -----
    attn = jnp.dot(a[0], wo[:dk, :], preferred_element_type=jnp.float32)
    for h in range(1, head_num):
        attn = attn + jnp.dot(a[h], wo[h * dk:(h + 1) * dk, :],
                              preferred_element_type=jnp.float32)

    # ----- residual + whole-tensor LN (kept in vregs) -----
    x1 = _whole_tensor_layer_norm(attn + x)

    # ----- FFN (sigmoid MLP); down projection contracts against wd.T directly -----
    u = jax.nn.sigmoid(jnp.dot(x1, wu, preferred_element_type=jnp.float32))   # (B*L, I)
    y1 = lax.dot_general(u, wdT, (((1,), (1,)), ((), ())),
                         preferred_element_type=jnp.float32) + x1
    y1 = _whole_tensor_layer_norm(y1)

    o_ref[...] = y1.astype(o_ref.dtype)     # single store at the end


def pack_weights(wq, wk, wv, wo, wu, wd, dk=DK):
    """One-time (init-time) packing: [wq/sqrt(dk) | wk | wv | wo | wu | wd.T] -> (D, 256)."""
    scale = 1.0 / (dk ** 0.5)
    return jnp.concatenate([wq * scale, wk, wv, wo, wu, wd.T], axis=1)


@jax.jit
def encoder_forward(x, w_in):
    """x: (batch, seq, dm) float32, w_in: packed weights -> (batch, seq, dm) float32."""
    B, L, D = x.shape
    assert HEAD_NUM * DK == D, "packing relies on head_num * dk == dm (true for this Config)"
    x2d = x.reshape(B * L, D)

    kernel = functools.partial(encoder_kernel, batch=B, seq=L, head_num=HEAD_NUM,
                               dk=DK, dm=D, inter=INTERMEDIATE)
    out = pl.pallas_call(
        kernel,
        out_shape=jax.ShapeDtypeStruct((B * L, D), x.dtype),
        in_specs=[pl.BlockSpec(memory_space=pltpu.MemorySpace.VMEM)] * 2,
        out_specs=pl.BlockSpec(memory_space=pltpu.MemorySpace.VMEM),
    )(x2d, w_in)
    return out.reshape(B, L, D)


# ---------------- pure-JAX reference (mirrors the PyTorch forward) ----------------
def reference(x, wq, wk, wv, wo, wu, wd):
    B, L, D = x.shape
    q = (x @ wq).reshape(B, L, HEAD_NUM, DK).transpose(0, 2, 1, 3)
    k = (x @ wk).reshape(B, L, HEAD_NUM, DK).transpose(0, 2, 1, 3)
    v = (x @ wv).reshape(B, L, HEAD_NUM, DK).transpose(0, 2, 1, 3)
    s = jnp.einsum('bhld,bhkd->bhlk', q, k) / (DK ** 0.5)
    p = jax.nn.softmax(s, axis=-1)
    a = jnp.einsum('bhlk,bhkd->bhld', p, v).transpose(0, 2, 1, 3).reshape(B, L, HEAD_NUM * DK)
    attn = a @ wo

    def whole_tensor_ln(t):
        m = jnp.mean(t)
        var = jnp.mean(jnp.square(t - m))
        return (t - m) * lax.rsqrt(var + EPS)

    x1 = whole_tensor_ln(attn + x)
    y1 = jax.nn.sigmoid(x1 @ wu) @ wd + x1
    return whole_tensor_ln(y1)


if __name__ == "__main__":
    key = jax.random.PRNGKey(0)
    kx, kq, kk, kv, ko, ku, kd = jax.random.split(key, 7)

    x = jax.random.normal(kx, (BATCH, SEQ, DM), dtype=jnp.float32)
    # deterministic synthetic weights, stored as (in_features, out_features)
    wq = jax.random.normal(kq, (DM, HEAD_NUM * DK), dtype=jnp.float32) / (DM ** 0.5)
    wk = jax.random.normal(kk, (DM, HEAD_NUM * DK), dtype=jnp.float32) / (DM ** 0.5)
    wv = jax.random.normal(kv, (DM, HEAD_NUM * DK), dtype=jnp.float32) / (DM ** 0.5)
    wo = jax.random.normal(ko, (HEAD_NUM * DK, DM), dtype=jnp.float32) / ((HEAD_NUM * DK) ** 0.5)
    wu = jax.random.normal(ku, (DM, INTERMEDIATE), dtype=jnp.float32) / (DM ** 0.5)
    wd = jax.random.normal(kd, (INTERMEDIATE, DM), dtype=jnp.float32) / (INTERMEDIATE ** 0.5)

    # One-time weight packing (init-time, outside the per-call path).
    w_in = jax.block_until_ready(pack_weights(wq, wk, wv, wo, wu, wd))

    out = encoder_forward(x, w_in)
    out = jax.block_until_ready(out)

    ref = jax.block_until_ready(reference(x, wq, wk, wv, wo, wu, wd))
    np.testing.assert_allclose(np.asarray(out), np.asarray(ref), atol=1e-4, rtol=1e-4)

    print("KERNEL_OK")
</pallas_src>

<mosaic_0001>
module attributes {stable_mosaic.version = 11 : i64} {
  func.func @encoder_kernel(%arg0: memref<16x32xf32, #tpu.memory_space<vmem>>, %arg1: memref<32x256xf32, #tpu.memory_space<vmem>>, %arg2: memref<16x32xf32, #tpu.memory_space<vmem>>) attributes {dimension_semantics = [], scalar_prefetch = 0 : i64, scratch_operands = 0 : i64, tpu.core_type = #tpu.core_type<tc>} {
    %c0 = arith.constant 0 : index
    %c0_0 = arith.constant 0 : index
    %0 = vector.load %arg0[%c0, %c0_0] : memref<16x32xf32, #tpu.memory_space<vmem>>, vector<16x32xf32>
    %c0_1 = arith.constant 0 : index
    %c0_2 = arith.constant 0 : index
    %1 = vector.load %arg1[%c0_1, %c0_2] : memref<32x256xf32, #tpu.memory_space<vmem>>, vector<32x256xf32>
    %2 = vector.extract_strided_slice %1 {offsets = [0, 0], sizes = [32, 96], strides = [1, 1]} : vector<32x256xf32> to vector<32x96xf32>
    %3 = vector.extract_strided_slice %1 {offsets = [0, 96], sizes = [32, 32], strides = [1, 1]} : vector<32x256xf32> to vector<32x32xf32>
    %4 = vector.extract_strided_slice %1 {offsets = [0, 128], sizes = [32, 64], strides = [1, 1]} : vector<32x256xf32> to vector<32x64xf32>
    %5 = vector.extract_strided_slice %1 {offsets = [0, 192], sizes = [32, 64], strides = [1, 1]} : vector<32x256xf32> to vector<32x64xf32>
    %cst = arith.constant dense<0.000000e+00> : vector<16x96xf32>
    %6 = tpu.matmul %0, %2, %cst {dimension_numbers = #tpu.dot_dimension_numbers<[1], [0], [0], [1], [0, 0, 1, 1], [], []>} : vector<16x32xf32>, vector<32x96xf32>, vector<16x96xf32> -> vector<16x96xf32>
    %7 = vector.extract_strided_slice %6 {offsets = [0, 0], sizes = [16, 32], strides = [1, 1]} : vector<16x96xf32> to vector<16x32xf32>
    %8 = vector.extract_strided_slice %7 {offsets = [0, 0], sizes = [16, 8], strides = [1, 1]} : vector<16x32xf32> to vector<16x8xf32>
    %9 = vector.extract_strided_slice %7 {offsets = [0, 8], sizes = [16, 8], strides = [1, 1]} : vector<16x32xf32> to vector<16x8xf32>
    %10 = vector.extract_strided_slice %7 {offsets = [0, 16], sizes = [16, 8], strides = [1, 1]} : vector<16x32xf32> to vector<16x8xf32>
    %11 = vector.extract_strided_slice %7 {offsets = [0, 24], sizes = [16, 8], strides = [1, 1]} : vector<16x32xf32> to vector<16x8xf32>
    %12 = vector.shape_cast %8 : vector<16x8xf32> to vector<1x16x8xf32>
    %13 = vector.shape_cast %9 : vector<16x8xf32> to vector<1x16x8xf32>
    %14 = vector.shape_cast %10 : vector<16x8xf32> to vector<1x16x8xf32>
    %15 = vector.shape_cast %11 : vector<16x8xf32> to vector<1x16x8xf32>
    %16 = tpu.concatenate %12, %13, %14, %15 in 0 : vector<1x16x8xf32>, vector<1x16x8xf32>, vector<1x16x8xf32>, vector<1x16x8xf32> -> vector<4x16x8xf32>
    %17 = vector.shape_cast %16 : vector<4x16x8xf32> to vector<8x8x8xf32>
    %18 = vector.extract_strided_slice %6 {offsets = [0, 32], sizes = [16, 32], strides = [1, 1]} : vector<16x96xf32> to vector<16x32xf32>
    %19 = vector.extract_strided_slice %18 {offsets = [0, 0], sizes = [16, 8], strides = [1, 1]} : vector<16x32xf32> to vector<16x8xf32>
    %20 = vector.extract_strided_slice %18 {offsets = [0, 8], sizes = [16, 8], strides = [1, 1]} : vector<16x32xf32> to vector<16x8xf32>
    %21 = vector.extract_strided_slice %18 {offsets = [0, 16], sizes = [16, 8], strides = [1, 1]} : vector<16x32xf32> to vector<16x8xf32>
    %22 = vector.extract_strided_slice %18 {offsets = [0, 24], sizes = [16, 8], strides = [1, 1]} : vector<16x32xf32> to vector<16x8xf32>
    %23 = vector.shape_cast %19 : vector<16x8xf32> to vector<1x16x8xf32>
    %24 = vector.shape_cast %20 : vector<16x8xf32> to vector<1x16x8xf32>
    %25 = vector.shape_cast %21 : vector<16x8xf32> to vector<1x16x8xf32>
    %26 = vector.shape_cast %22 : vector<16x8xf32> to vector<1x16x8xf32>
    %27 = tpu.concatenate %23, %24, %25, %26 in 0 : vector<1x16x8xf32>, vector<1x16x8xf32>, vector<1x16x8xf32>, vector<1x16x8xf32> -> vector<4x16x8xf32>
    %28 = vector.shape_cast %27 : vector<4x16x8xf32> to vector<8x8x8xf32>
    %29 = vector.extract_strided_slice %6 {offsets = [0, 64], sizes = [16, 32], strides = [1, 1]} : vector<16x96xf32> to vector<16x32xf32>
    %30 = vector.extract_strided_slice %29 {offsets = [0, 0], sizes = [16, 8], strides = [1, 1]} : vector<16x32xf32> to vector<16x8xf32>
    %31 = vector.extract_strided_slice %29 {offsets = [0, 8], sizes = [16, 8], strides = [1, 1]} : vector<16x32xf32> to vector<16x8xf32>
    %32 = vector.extract_strided_slice %29 {offsets = [0, 16], sizes = [16, 8], strides = [1, 1]} : vector<16x32xf32> to vector<16x8xf32>
    %33 = vector.extract_strided_slice %29 {offsets = [0, 24], sizes = [16, 8], strides = [1, 1]} : vector<16x32xf32> to vector<16x8xf32>
    %34 = vector.shape_cast %30 : vector<16x8xf32> to vector<1x16x8xf32>
    %35 = vector.shape_cast %31 : vector<16x8xf32> to vector<1x16x8xf32>
    %36 = vector.shape_cast %32 : vector<16x8xf32> to vector<1x16x8xf32>
    %37 = vector.shape_cast %33 : vector<16x8xf32> to vector<1x16x8xf32>
    %38 = tpu.concatenate %34, %35, %36, %37 in 0 : vector<1x16x8xf32>, vector<1x16x8xf32>, vector<1x16x8xf32>, vector<1x16x8xf32> -> vector<4x16x8xf32>
    %39 = vector.shape_cast %38 : vector<4x16x8xf32> to vector<8x8x8xf32>
    %cst_3 = arith.constant dense<0.000000e+00> : vector<8x8x8xf32>
    %40 = tpu.matmul %17, %28, %cst_3 {dimension_numbers = #tpu.dot_dimension_numbers<[2], [2], [1], [1], [0, 0, 0, 1, 1, 1], [0], [0]>} : vector<8x8x8xf32>, vector<8x8x8xf32>, vector<8x8x8xf32> -> vector<8x8x8xf32>
    %cst_4 = arith.constant dense<0xFF800000> : vector<8x8xf32>
    %41 = vector.multi_reduction <maximumf>, %40, %cst_4 [2] : vector<8x8x8xf32> to vector<8x8xf32>
    %42 = vector.shape_cast %41 : vector<8x8xf32> to vector<8x8x1xf32>
    %43 = vector.broadcast %42 : vector<8x8x1xf32> to vector<8x8x8xf32>
    %44 = arith.subf %40, %43 : vector<8x8x8xf32>
    %45 = math.exp %44 : vector<8x8x8xf32>
    %cst_5 = arith.constant dense<0.000000e+00> : vector<8x8xf32>
    %46 = vector.multi_reduction <add>, %45, %cst_5 [2] : vector<8x8x8xf32> to vector<8x8xf32>
    %47 = vector.shape_cast %46 : vector<8x8xf32> to vector<8x8x1xf32>
    %48 = tpu.reciprocal %47 : vector<8x8x1xf32> -> vector<8x8x1xf32>
    %49 = vector.broadcast %48 : vector<8x8x1xf32> to vector<8x8x8xf32>
    %50 = arith.mulf %45, %49 : vector<8x8x8xf32>
    %cst_6 = arith.constant dense<0.000000e+00> : vector<8x8x8xf32>
    %51 = tpu.matmul %50, %39, %cst_6 {dimension_numbers = #tpu.dot_dimension_numbers<[2], [1], [1], [2], [0, 0, 0, 1, 1, 2], [0], [0]>} : vector<8x8x8xf32>, vector<8x8x8xf32>, vector<8x8x8xf32> -> vector<8x8x8xf32>
    %52 = vector.shape_cast %51 : vector<8x8x8xf32> to vector<4x16x8xf32>
    %53 = vector.extract_strided_slice %52 {offsets = [0, 0, 0], sizes = [1, 16, 8], strides = [1, 1, 1]} : vector<4x16x8xf32> to vector<1x16x8xf32>
    %54 = vector.shape_cast %53 : vector<1x16x8xf32> to vector<16x8xf32>
    %55 = vector.extract_strided_slice %3 {offsets = [0, 0], sizes = [8, 32], strides = [1, 1]} : vector<32x32xf32> to vector<8x32xf32>
    %cst_7 = arith.constant dense<0.000000e+00> : vector<16x32xf32>
    %56 = tpu.matmul %54, %55, %cst_7 {dimension_numbers = #tpu.dot_dimension_numbers<[1], [0], [0], [1], [0, 0, 1, 1], [], []>} : vector<16x8xf32>, vector<8x32xf32>, vector<16x32xf32> -> vector<16x32xf32>
    %57 = vector.extract_strided_slice %52 {offsets = [1, 0, 0], sizes = [1, 16, 8], strides = [1, 1, 1]} : vector<4x16x8xf32> to vector<1x16x8xf32>
    %58 = vector.shape_cast %57 : vector<1x16x8xf32> to vector<16x8xf32>
    %59 = vector.extract_strided_slice %3 {offsets = [8, 0], sizes = [8, 32], strides = [1, 1]} : vector<32x32xf32> to vector<8x32xf32>
    %cst_8 = arith.constant dense<0.000000e+00> : vector<16x32xf32>
    %60 = tpu.matmul %58, %59, %cst_8 {dimension_numbers = #tpu.dot_dimension_numbers<[1], [0], [0], [1], [0, 0, 1, 1], [], []>} : vector<16x8xf32>, vector<8x32xf32>, vector<16x32xf32> -> vector<16x32xf32>
    %61 = arith.addf %56, %60 : vector<16x32xf32>
    %62 = vector.extract_strided_slice %52 {offsets = [2, 0, 0], sizes = [1, 16, 8], strides = [1, 1, 1]} : vector<4x16x8xf32> to vector<1x16x8xf32>
    %63 = vector.shape_cast %62 : vector<1x16x8xf32> to vector<16x8xf32>
    %64 = vector.extract_strided_slice %3 {offsets = [16, 0], sizes = [8, 32], strides = [1, 1]} : vector<32x32xf32> to vector<8x32xf32>
    %cst_9 = arith.constant dense<0.000000e+00> : vector<16x32xf32>
    %65 = tpu.matmul %63, %64, %cst_9 {dimension_numbers = #tpu.dot_dimension_numbers<[1], [0], [0], [1], [0, 0, 1, 1], [], []>} : vector<16x8xf32>, vector<8x32xf32>, vector<16x32xf32> -> vector<16x32xf32>
    %66 = arith.addf %61, %65 : vector<16x32xf32>
    %67 = vector.extract_strided_slice %52 {offsets = [3, 0, 0], sizes = [1, 16, 8], strides = [1, 1, 1]} : vector<4x16x8xf32> to vector<1x16x8xf32>
    %68 = vector.shape_cast %67 : vector<1x16x8xf32> to vector<16x8xf32>
    %69 = vector.extract_strided_slice %3 {offsets = [24, 0], sizes = [8, 32], strides = [1, 1]} : vector<32x32xf32> to vector<8x32xf32>
    %cst_10 = arith.constant dense<0.000000e+00> : vector<16x32xf32>
    %70 = tpu.matmul %68, %69, %cst_10 {dimension_numbers = #tpu.dot_dimension_numbers<[1], [0], [0], [1], [0, 0, 1, 1], [], []>} : vector<16x8xf32>, vector<8x32xf32>, vector<16x32xf32> -> vector<16x32xf32>
    %71 = arith.addf %66, %70 : vector<16x32xf32>
    %72 = arith.addf %71, %0 : vector<16x32xf32>
    %73 = vector.shape_cast %72 : vector<16x32xf32> to vector<1x16x32xf32>
    %cst_11 = arith.constant dense<0.000000e+00> : vector<1xf32>
    %74 = vector.multi_reduction <add>, %73, %cst_11 [1, 2] : vector<1x16x32xf32> to vector<1xf32>
    %75 = vector.shape_cast %74 : vector<1xf32> to vector<1x1x1xf32>
    %76 = vector.extract %75[0, 0, 0] : f32 from vector<1x1x1xf32>
    %77 = arith.mulf %72, %72 : vector<16x32xf32>
    %78 = vector.shape_cast %77 : vector<16x32xf32> to vector<1x16x32xf32>
    %cst_12 = arith.constant dense<0.000000e+00> : vector<1xf32>
    %79 = vector.multi_reduction <add>, %78, %cst_12 [1, 2] : vector<1x16x32xf32> to vector<1xf32>
    %80 = vector.shape_cast %79 : vector<1xf32> to vector<1x1x1xf32>
    %81 = vector.extract %80[0, 0, 0] : f32 from vector<1x1x1xf32>
    %cst_13 = arith.constant 0.001953125 : f32
    %82 = arith.mulf %76, %cst_13 : f32
    %cst_14 = arith.constant 0.001953125 : f32
    %83 = arith.mulf %81, %cst_14 : f32
    %84 = arith.mulf %82, %82 : f32
    %85 = arith.subf %83, %84 : f32
    %86 = vector.broadcast %82 : f32 to vector<16x32xf32>
    %87 = arith.subf %72, %86 : vector<16x32xf32>
    %cst_15 = arith.constant 9.99999974E-6 : f32
    %88 = arith.addf %85, %cst_15 : f32
    %89 = math.rsqrt %88 : f32
    %90 = vector.broadcast %89 : f32 to vector<16x32xf32>
    %91 = arith.mulf %87, %90 : vector<16x32xf32>
    %cst_16 = arith.constant dense<0.000000e+00> : vector<16x64xf32>
    %92 = tpu.matmul %91, %4, %cst_16 {dimension_numbers = #tpu.dot_dimension_numbers<[1], [0], [0], [1], [0, 0, 1, 1], [], []>} : vector<16x32xf32>, vector<32x64xf32>, vector<16x64xf32> -> vector<16x64xf32>
    %93 = arith.negf %92 : vector<16x64xf32>
    %94 = math.exp %93 : vector<16x64xf32>
    %cst_17 = arith.constant 1.000000e+00 : f32
    %95 = vector.broadcast %cst_17 : f32 to vector<16x64xf32>
    %96 = arith.addf %95, %94 : vector<16x64xf32>
    %97 = arith.divf %95, %96 : vector<16x64xf32>
    %cst_18 = arith.constant dense<0.000000e+00> : vector<16x32xf32>
    %98 = tpu.matmul %97, %5, %cst_18 {dimension_numbers = #tpu.dot_dimension_numbers<[1], [1], [0], [0], [0, 0, 1, 0], [], []>} : vector<16x64xf32>, vector<32x64xf32>, vector<16x32xf32> -> vector<16x32xf32>
    %99 = arith.addf %98, %91 : vector<16x32xf32>
    %100 = vector.shape_cast %99 : vector<16x32xf32> to vector<1x16x32xf32>
    %cst_19 = arith.constant dense<0.000000e+00> : vector<1xf32>
    %101 = vector.multi_reduction <add>, %100, %cst_19 [1, 2] : vector<1x16x32xf32> to vector<1xf32>
    %102 = vector.shape_cast %101 : vector<1xf32> to vector<1x1x1xf32>
    %103 = vector.extract %102[0, 0, 0] : f32 from vector<1x1x1xf32>
    %104 = arith.mulf %99, %99 : vector<16x32xf32>
    %105 = vector.shape_cast %104 : vector<16x32xf32> to vector<1x16x32xf32>
    %cst_20 = arith.constant dense<0.000000e+00> : vector<1xf32>
    %106 = vector.multi_reduction <add>, %105, %cst_20 [1, 2] : vector<1x16x32xf32> to vector<1xf32>
    %107 = vector.shape_cast %106 : vector<1xf32> to vector<1x1x1xf32>
    %108 = vector.extract %107[0, 0, 0] : f32 from vector<1x1x1xf32>
    %cst_21 = arith.constant 0.001953125 : f32
    %109 = arith.mulf %103, %cst_21 : f32
    %cst_22 = arith.constant 0.001953125 : f32
    %110 = arith.mulf %108, %cst_22 : f32
    %111 = arith.mulf %109, %109 : f32
    %112 = arith.subf %110, %111 : f32
    %113 = vector.broadcast %109 : f32 to vector<16x32xf32>
    %114 = arith.subf %99, %113 : vector<16x32xf32>
    %cst_23 = arith.constant 9.99999974E-6 : f32
    %115 = arith.addf %112, %cst_23 : f32
    %116 = math.rsqrt %115 : f32
    %117 = vector.broadcast %116 : f32 to vector<16x32xf32>
    %118 = arith.mulf %114, %117 : vector<16x32xf32>
    %c0_24 = arith.constant 0 : index
    %c0_25 = arith.constant 0 : index
    %119 = vector.load %arg2[%c0_24, %c0_25] : memref<16x32xf32, #tpu.memory_space<vmem>>, vector<16x32xf32>
    tpu.vector_store %arg2[%c0_24, %c0_25], %118 {strides = array<i32>} : memref<16x32xf32, #tpu.memory_space<vmem>>, vector<16x32xf32>,
    return
  }
}

</mosaic_0001>

<llo_original>
// kernel: encoder_forward.1
$region0: #{encoder_forward.1}
  #allocation0 [shape = 'u32[]', space=smem, size = 0x4, offset = 0x4, fixed_abs, tag = 'smem constant byte address 0x4 - core index']
  #allocation1 [shape = 'u32[144,128]{1,0:T(1,128)}', space=vmem, size = 0x12000, scoped, tag = 'internal scratch']
  %s0 = inlined_call_operand.hbm [shape: f32[16,32], index: 0, kind: input, shape index: {}]
  %s1 = inlined_call_operand.hbm [shape: f32[32,256], index: 1, kind: input, shape index: {}]
  %s2 = inlined_call_operand.hbm [shape: f32[16,32], index: 2, kind: output, shape index: {}]
  %s3 = sld [smem:[#allocation0]]
  $region26: #{encoder_forward.1} parent=0
    _
  %s5 = ssub.s32 1, %s3
  %s6 = scalar_select 0, %s5, %s3
  $region1: #{encoder_forward.1} parent=0
    #allocation2 [shape = 'u8[8192]{0}', space=vmem, size = 0x2000, scoped, tag = 'input window, operand 0, single buffered']
    #allocation3 [shape = 's32[1]{0}', space=sflag, size = 0x4, scoped, tag = 'scoped memory for encoder_forward.1']
    #allocation4 [shape = 's32[1]{0}', space=sflag, size = 0x4, scoped, tag = 'scoped memory for encoder_forward.1']
    #allocation5 [shape = 'u8[32768]{0}', space=vmem, size = 0x8000, scoped, tag = 'input window, operand 1, single buffered']
    #allocation6 [shape = 's32[1]{0}', space=sflag, size = 0x4, scoped, tag = 'scoped memory for encoder_forward.1']
    #allocation7 [shape = 'u8[8192]{0}', space=vmem, size = 0x2000, scoped, tag = 'output window, operand 0, single buffered']
    %7 = vsyncpa [#allocation3], 0
    %8 = vsyncpa [#allocation6], 0
    %9 = vsyncpa [#allocation4], 0
    // Predicated region
    $region2: #{encoder_forward.1} parent=1 // pred_check
      _
    $region3: #{encoder_forward.1} parent=1 // pred_check_branch
      %11 = sbr.rel (0) target = $region5
    $region4: #{encoder_forward.1} parent=1 // pred_region
      %s13 = ssub.s32 256, 256
      %14 = vsyncadd [#allocation3], %s13
      %s15 = sshll.u32 [#allocation2], 4
      %s16 = int_to_ptr.vmem [resolvable:$true] %s15
      %21 = dma.hbm_to_vmem [thread:$0]  %s0, 256, %s16, [#allocation3], 128, 128, 8
    $region5: #{encoder_forward.1} parent=1 // pred_fallthru
      _
    // Predicated region
    $region6: #{encoder_forward.1} parent=1 // pred_check
      _
    $region7: #{encoder_forward.1} parent=1 // pred_check_branch
      %23 = sbr.rel (0) target = $region9
    $region8: #{encoder_forward.1} parent=1 // pred_region
      %s25 = ssub.s32 1024, 1024
      %26 = vsyncadd [#allocation6], %s25
      %s27 = sshll.u32 [#allocation5], 4
      %s28 = int_to_ptr.vmem [resolvable:$true] %s27
      %33 = dma.hbm_to_vmem [thread:$0]  %s1, 1024, %s28, [#allocation6], 256, 256, 16
    $region9: #{encoder_forward.1} parent=1 // pred_fallthru
      _
    // Predicated region
    $region10: #{encoder_forward.1} parent=1 // pred_check
      _
    $region11: #{encoder_forward.1} parent=1 // pred_check_branch
      %35 = sbr.rel (0) target = $region13
    $region12: #{encoder_forward.1} parent=1 // pred_region
      %36 = dma.done [#allocation3], 256
    $region13: #{encoder_forward.1} parent=1 // pred_fallthru
      _
    // Predicated region
    $region14: #{encoder_forward.1} parent=1 // pred_check
      _
    $region15: #{encoder_forward.1} parent=1 // pred_check_branch
      %38 = sbr.rel (0) target = $region17
    $region16: #{encoder_forward.1} parent=1 // pred_region
      %39 = dma.done [#allocation6], 1024
    $region17: #{encoder_forward.1} parent=1 // pred_fallthru
      _
    %v40 = vld [vmem:[#allocation2] sm:$0xff]
    %v41 = vld [vmem:[#allocation2 + $0x8] sm:$0xff]
    %v42 = vld [vmem:[#allocation5] sm:$0xff]
    %v43 = vld [vmem:[#allocation5 + $0x8] sm:$0xff]
    %v44 = vld [vmem:[#allocation5 + $0x10] sm:$0xff]
    %v45 = vld [vmem:[#allocation5 + $0x18] sm:$0xff]
    %v46 = vld [vmem:[#allocation5 + $0x20] sm:$0xff]
    %v47 = vld [vmem:[#allocation5 + $0x28] sm:$0xff]
    %v48 = vld [vmem:[#allocation5 + $0x30] sm:$0xff]
    %v49 = vld [vmem:[#allocation5 + $0x38] sm:$0xff]
    %vm50 = vcmask 261120
    %v52 = vsel %vm50, %v40, 0
    %v55 = vsel %vm50, %v41, 0
    %57 = vmatprep.subr.mxu0 0.0
    %58 = vmatpush1.msra.mxu0 0.0
    %59 = vmatprep.subr.mxu0 0.0
    %60 = vmatpush1.msra.mxu0 0.0
    %61 = vmatprep.subr.mxu0 0.0
    %62 = vmatpush1.msra.mxu0 0.0
    %63 = vmatprep.subr.mxu0 0.0
    %64 = vmatpush1.msra.mxu0 0.0
    %65 = vmatprep.subr.mxu0 0.0
    %66 = vmatpush1.msra.mxu0 0.0
    %67 = vmatprep.subr.mxu0 0.0
    %68 = vmatpush1.msra.mxu0 0.0
    %69 = vmatprep.subr.mxu0 0.0
    %70 = vmatpush1.msra.mxu0 0.0
    %71 = vmatprep.subr.mxu0 0.0
    %72 = vmatpush1.msra.mxu0 0.0
    %73 = vmatprep.subr.mxu0 0.0
    %74 = vmatpush1.msra.mxu0 0.0
    %75 = vmatprep.subr.mxu0 0.0
    %76 = vmatpush1.msra.mxu0 0.0
    %77 = vmatprep.subr.mxu0 0.0
    %78 = vmatpush1.msra.mxu0 0.0
    %79 = vmatprep.subr.mxu0 0.0
    %80 = vmatpush1.msra.mxu0 0.0
    %81 = vmatprep.subr.mxu0 0.0
    %82 = vmatpush1.msra.mxu0 %v48
    %83 = vmatprep.subr.mxu0 0.0
    %84 = vmatpush1.msra.mxu0 %v46
    %85 = vmatprep.subr.mxu0 0.0
    %86 = vmatpush1.msra.mxu0 %v44
    %87 = vmatprep.subr.mxu0 0.0
    %88 = vmatpush1.msra.mxu0 %v42
    %89 = vmatprep.subr.mxu0 0.0
    %90 = vmatpush2.msra.mxu0 0.0
    %91 = vmatprep.subr.mxu0 0.0
    %92 = vmatpush2.msra.mxu0 0.0
    %93 = vmatprep.subr.mxu0 0.0
    %94 = vmatpush2.msra.mxu0 0.0
    %95 = vmatprep.subr.mxu0 0.0
    %96 = vmatpush2.msra.mxu0 0.0
    %97 = vmatprep.subr.mxu0 0.0
    %98 = vmatpush2.msra.mxu0 0.0
    %99 = vmatprep.subr.mxu0 0.0
    %100 = vmatpush2.msra.mxu0 0.0
    %101 = vmatprep.subr.mxu0 0.0
    %102 = vmatpush2.msra.mxu0 0.0
    %103 = vmatprep.subr.mxu0 0.0
    %104 = vmatpush2.msra.mxu0 0.0
    %105 = vmatprep.subr.mxu0 0.0
    %106 = vmatpush2.msra.mxu0 0.0
    %107 = vmatprep.subr.mxu0 0.0
    %108 = vmatpush2.msra.mxu0 0.0
    %109 = vmatprep.subr.mxu0 0.0
    %110 = vmatpush2.msra.mxu0 0.0
    %111 = vmatprep.subr.mxu0 0.0
    %112 = vmatpush2.msra.mxu0 0.0
    %113 = vmatprep.subr.mxu0 0.0
    %114 = vmatpush2.msra.mxu0 0.0
    %115 = vmatprep.subr.mxu0 0.0
    %116 = vmatpush2.msra.mxu0 0.0
    %117 = vmatprep.subr.mxu0 0.0
    %118 = vmatpush2.msra.mxu0 0.0
    %119 = vmatprep.subr.mxu0 0.0
    %120 = vmatpush2.msra.mxu0 0.0
    %121 = vmatprep.mubr.f32.mxu0 0.0
    %122 = vmatmul.mubr.f32.gmra.mxu0 %v52
    %v123 = vpop.f32.mrf.mxu0
    %v124 = vadd.f32 0.0, %v123
    %v125 = vpop.f32.mrf.mxu0
    %126 = vmatprep.mubr.f32.mxu0 0.0
    %127 = vmatmul.mubr.f32.gmra.mxu0 %v55
    %v128 = vpop.f32.mrf.mxu0
    %v129 = vadd.f32 0.0, %v128
    %v130 = vpop.f32.mrf.mxu0
    %131 = vdwg.mxu0
    %134 = vrot.lane.b32.xlu0 %v124, 120
    %v135 = vpop.permute.xlu0 %134
    %136 = vrot.lane.b32.xlu0 %v129, 120
    %v137 = vpop.permute.xlu0 %136
    %138 = vrot.lane.b32.xlu0 %v124, 112
    %v139 = vpop.permute.xlu0 %138
    %140 = vrot.lane.b32.xlu0 %v129, 112
    %v141 = vpop.permute.xlu0 %140
    %142 = vrot.lane.b32.xlu0 %v124, 104
    %v143 = vpop.permute.xlu0 %142
    %144 = vrot.lane.b32.xlu0 %v129, 104
    %v145 = vpop.permute.xlu0 %144
    %146 = vrot.lane.b32.xlu0 %v124, 96
    %v147 = vpop.permute.xlu0 %146
    %vm148 = vcmask 64512
    %v149 = vsel %vm148, %v124, 0
    %v151 = vsel %vm148, %v147, 0
    %153 = vmatprep.subr.mxu0 0.0
    %154 = vmatpush1.xpose.msra.mxu0 0.0
    %155 = vmatprep.subr.mxu0 0.0
    %156 = vmatpush1.xpose.msra.mxu0 0.0
    %157 = vmatprep.subr.mxu0 0.0
    %158 = vmatpush1.xpose.msra.mxu0 0.0
    %159 = vmatprep.subr.mxu0 0.0
    %160 = vmatpush1.xpose.msra.mxu0 0.0
    %161 = vmatprep.subr.mxu0 0.0
    %162 = vmatpush1.xpose.msra.mxu0 0.0
    %163 = vmatprep.subr.mxu0 0.0
    %164 = vmatpush1.xpose.msra.mxu0 0.0
    %165 = vmatprep.subr.mxu0 0.0
    %166 = vmatpush1.xpose.msra.mxu0 0.0
    %167 = vmatprep.subr.mxu0 0.0
    %168 = vmatpush1.xpose.msra.mxu0 0.0
    %169 = vmatprep.subr.mxu0 0.0
    %170 = vmatpush1.xpose.msra.mxu0 0.0
    %171 = vmatprep.subr.mxu0 0.0
    %172 = vmatpush1.xpose.msra.mxu0 0.0
    %173 = vmatprep.subr.mxu0 0.0
    %174 = vmatpush1.xpose.msra.mxu0 0.0
    %175 = vmatprep.subr.mxu0 0.0
    %176 = vmatpush1.xpose.msra.mxu0 0.0
    %177 = vmatprep.subr.mxu0 0.0
    %178 = vmatpush1.xpose.msra.mxu0 0.0
    %179 = vmatprep.subr.mxu0 0.0
    %180 = vmatpush1.xpose.msra.mxu0 0.0
    %181 = vmatprep.subr.mxu0 0.0
    %182 = vmatpush1.xpose.msra.mxu0 0.0
    %183 = vmatprep.subr.mxu0 0.0
    %184 = vmatpush1.xpose.msra.mxu0 %v151
    %185 = vmatprep.subr.mxu0 0.0
    %186 = vmatpush2.xpose.msra.mxu0 0.0
    %187 = vmatprep.subr.mxu0 0.0
    %188 = vmatpush2.xpose.msra.mxu0 0.0
    %189 = vmatprep.subr.mxu0 0.0
    %190 = vmatpush2.xpose.msra.mxu0 0.0
    %191 = vmatprep.subr.mxu0 0.0
    %192 = vmatpush2.xpose.msra.mxu0 0.0
    %193 = vmatprep.subr.mxu0 0.0
    %194 = vmatpush2.xpose.msra.mxu0 0.0
    %195 = vmatprep.subr.mxu0 0.0
    %196 = vmatpush2.xpose.msra.mxu0 0.0
    %197 = vmatprep.subr.mxu0 0.0
    %198 = vmatpush2.xpose.msra.mxu0 0.0
    %199 = vmatprep.subr.mxu0 0.0
    %200 = vmatpush2.xpose.msra.mxu0 0.0
    %201 = vmatprep.subr.mxu0 0.0
    %202 = vmatpush2.xpose.msra.mxu0 0.0
    %203 = vmatprep.subr.mxu0 0.0
    %204 = vmatpush2.xpose.msra.mxu0 0.0
    %205 = vmatprep.subr.mxu0 0.0
    %206 = vmatpush2.xpose.msra.mxu0 0.0
    %207 = vmatprep.subr.mxu0 0.0
    %208 = vmatpush2.xpose.msra.mxu0 0.0
    %209 = vmatprep.subr.mxu0 0.0
    %210 = vmatpush2.xpose.msra.mxu0 0.0
    %211 = vmatprep.subr.mxu0 0.0
    %212 = vmatpush2.xpose.msra.mxu0 0.0
    %213 = vmatprep.subr.mxu0 0.0
    %214 = vmatpush2.xpose.msra.mxu0 0.0
    %215 = vmatprep.subr.mxu0 0.0
    %216 = vmatpush2.xpose.msra.mxu0 0.0
    %217 = vmatprep.mubr.f32.mxu0 0.0
    %218 = vmatmul.mubr.f32.gmra.mxu0 %v149
    %v219 = vpop.f32.mrf.mxu0
    %v220 = vadd.f32 0.0, %v219
    %v221 = vpop.f32.mrf.mxu0
    %222 = vdwg.mxu0
    %223 = vrot.lane.b32.xlu0 %v129, 96
    %v224 = vpop.permute.xlu0 %223
    %v225 = vsel %vm148, %v129, 0
    %v227 = vsel %vm148, %v224, 0
    %229 = vmatprep.subr.mxu0 0.0
    %230 = vmatpush1.xpose.msra.mxu0 0.0
    %231 = vmatprep.subr.mxu0 0.0
    %232 = vmatpush1.xpose.msra.mxu0 0.0
    %233 = vmatprep.subr.mxu0 0.0
    %234 = vmatpush1.xpose.msra.mxu0 0.0
    %235 = vmatprep.subr.mxu0 0.0
    %236 = vmatpush1.xpose.msra.mxu0 0.0
    %237 = vmatprep.subr.mxu0 0.0
    %238 = vmatpush1.xpose.msra.mxu0 0.0
    %239 = vmatprep.subr.mxu0 0.0
    %240 = vmatpush1.xpose.msra.mxu0 0.0
    %241 = vmatprep.subr.mxu0 0.0
    %242 = vmatpush1.xpose.msra.mxu0 0.0
    %243 = vmatprep.subr.mxu0 0.0
    %244 = vmatpush1.xpose.msra.mxu0 0.0
    %245 = vmatprep.subr.mxu0 0.0
    %246 = vmatpush1.xpose.msra.mxu0 0.0
    %247 = vmatprep.subr.mxu0 0.0
    %248 = vmatpush1.xpose.msra.mxu0 0.0
    %249 = vmatprep.subr.mxu0 0.0
    %250 = vmatpush1.xpose.msra.mxu0 0.0
    %251 = vmatprep.subr.mxu0 0.0
    %252 = vmatpush1.xpose.msra.mxu0 0.0
    %253 = vmatprep.subr.mxu0 0.0
    %254 = vmatpush1.xpose.msra.mxu0 0.0
    %255 = vmatprep.subr.mxu0 0.0
    %256 = vmatpush1.xpose.msra.mxu0 0.0
    %257 = vmatprep.subr.mxu0 0.0
    %258 = vmatpush1.xpose.msra.mxu0 0.0
    %259 = vmatprep.subr.mxu0 0.0
    %260 = vmatpush1.xpose.msra.mxu0 %v227
    %261 = vmatprep.subr.mxu0 0.0
    %262 = vmatpush2.xpose.msra.mxu0 0.0
    %263 = vmatprep.subr.mxu0 0.0
    %264 = vmatpush2.xpose.msra.mxu0 0.0
    %265 = vmatprep.subr.mxu0 0.0
    %266 = vmatpush2.xpose.msra.mxu0 0.0
    %267 = vmatprep.subr.mxu0 0.0
    %268 = vmatpush2.xpose.msra.mxu0 0.0
    %269 = vmatprep.subr.mxu0 0.0
    %270 = vmatpush2.xpose.msra.mxu0 0.0
    %271 = vmatprep.subr.mxu0 0.0
    %272 = vmatpush2.xpose.msra.mxu0 0.0
    %273 = vmatprep.subr.mxu0 0.0
    %274 = vmatpush2.xpose.msra.mxu0 0.0
    %275 = vmatprep.subr.mxu0 0.0
    %276 = vmatpush2.xpose.msra.mxu0 0.0
    %277 = vmatprep.subr.mxu0 0.0
    %278 = vmatpush2.xpose.msra.mxu0 0.0
    %279 = vmatprep.subr.mxu0 0.0
    %280 = vmatpush2.xpose.msra.mxu0 0.0
    %281 = vmatprep.subr.mxu0 0.0
    %282 = vmatpush2.xpose.msra.mxu0 0.0
    %283 = vmatprep.subr.mxu0 0.0
    %284 = vmatpush2.xpose.msra.mxu0 0.0
    %285 = vmatprep.subr.mxu0 0.0
    %286 = vmatpush2.xpose.msra.mxu0 0.0
    %287 = vmatprep.subr.mxu0 0.0
    %288 = vmatpush2.xpose.msra.mxu0 0.0
    %289 = vmatprep.subr.mxu0 0.0
    %290 = vmatpush2.xpose.msra.mxu0 0.0
    %291 = vmatprep.subr.mxu0 0.0
    %292 = vmatpush2.xpose.msra.mxu0 0.0
    %293 = vmatprep.mubr.f32.mxu0 0.0
    %294 = vmatmul.mubr.f32.gmra.mxu0 %v225
    %v295 = vpop.f32.mrf.mxu0
    %v296 = vadd.f32 0.0, %v295
    %v297 = vpop.f32.mrf.mxu0
    %298 = vdwg.mxu0
    %299 = vrot.lane.b32.xlu0 %v135, 96
    %v300 = vpop.permute.xlu0 %299
    %v301 = vsel %vm148, %v135, 0
    %v303 = vsel %vm148, %v300, 0
    %305 = vmatprep.subr.mxu0 0.0
    %306 = vmatpush1.xpose.msra.mxu0 0.0
    %307 = vmatprep.subr.mxu0 0.0
    %308 = vmatpush1.xpose.msra.mxu0 0.0
    %309 = vmatprep.subr.mxu0 0.0
    %310 = vmatpush1.xpose.msra.mxu0 0.0
    %311 = vmatprep.subr.mxu0 0.0
    %312 = vmatpush1.xpose.msra.mxu0 0.0
    %313 = vmatprep.subr.mxu0 0.0
    %314 = vmatpush1.xpose.msra.mxu0 0.0
    %315 = vmatprep.subr.mxu0 0.0
    %316 = vmatpush1.xpose.msra.mxu0 0.0
    %317 = vmatprep.subr.mxu0 0.0
    %318 = vmatpush1.xpose.msra.mxu0 0.0
    %319 = vmatprep.subr.mxu0 0.0
    %320 = vmatpush1.xpose.msra.mxu0 0.0
    %321 = vmatprep.subr.mxu0 0.0
    %322 = vmatpush1.xpose.msra.mxu0 0.0
    %323 = vmatprep.subr.mxu0 0.0
    %324 = vmatpush1.xpose.msra.mxu0 0.0
    %325 = vmatprep.subr.mxu0 0.0
    %326 = vmatpush1.xpose.msra.mxu0 0.0
    %327 = vmatprep.subr.mxu0 0.0
    %328 = vmatpush1.xpose.msra.mxu0 0.0
    %329 = vmatprep.subr.mxu0 0.0
    %330 = vmatpush1.xpose.msra.mxu0 0.0
    %331 = vmatprep.subr.mxu0 0.0
    %332 = vmatpush1.xpose.msra.mxu0 0.0
    %333 = vmatprep.subr.mxu0 0.0
    %334 = vmatpush1.xpose.msra.mxu0 0.0
    %335 = vmatprep.subr.mxu0 0.0
    %336 = vmatpush1.xpose.msra.mxu0 %v303
    %337 = vmatprep.subr.mxu0 0.0
    %338 = vmatpush2.xpose.msra.mxu0 0.0
    %339 = vmatprep.subr.mxu0 0.0
    %340 = vmatpush2.xpose.msra.mxu0 0.0
    %341 = vmatprep.subr.mxu0 0.0
    %342 = vmatpush2.xpose.msra.mxu0 0.0
    %343 = vmatprep.subr.mxu0 0.0
    %344 = vmatpush2.xpose.msra.mxu0 0.0
    %345 = vmatprep.subr.mxu0 0.0
    %346 = vmatpush2.xpose.msra.mxu0 0.0
    %347 = vmatprep.subr.mxu0 0.0
    %348 = vmatpush2.xpose.msra.mxu0 0.0
    %349 = vmatprep.subr.mxu0 0.0
    %350 = vmatpush2.xpose.msra.mxu0 0.0
    %351 = vmatprep.subr.mxu0 0.0
    %352 = vmatpush2.xpose.msra.mxu0 0.0
    %353 = vmatprep.subr.mxu0 0.0
    %354 = vmatpush2.xpose.msra.mxu0 0.0
    %355 = vmatprep.subr.mxu0 0.0
    %356 = vmatpush2.xpose.msra.mxu0 0.0
    %357 = vmatprep.subr.mxu0 0.0
    %358 = vmatpush2.xpose.msra.mxu0 0.0
    %359 = vmatprep.subr.mxu0 0.0
    %360 = vmatpush2.xpose.msra.mxu0 0.0
    %361 = vmatprep.subr.mxu0 0.0
    %362 = vmatpush2.xpose.msra.mxu0 0.0
    %363 = vmatprep.subr.mxu0 0.0
    %364 = vmatpush2.xpose.msra.mxu0 0.0
    %365 = vmatprep.subr.mxu0 0.0
    %366 = vmatpush2.xpose.msra.mxu0 0.0
    %367 = vmatprep.subr.mxu0 0.0
    %368 = vmatpush2.xpose.msra.mxu0 0.0
    %369 = vmatprep.mubr.f32.mxu0 0.0
    %370 = vmatmul.mubr.f32.gmra.mxu0 %v301
    %v371 = vpop.f32.mrf.mxu0
    %v372 = vadd.f32 0.0, %v371
    %v373 = vpop.f32.mrf.mxu0
    %374 = vdwg.mxu0
    %375 = vrot.lane.b32.xlu0 %v137, 96
    %v376 = vpop.permute.xlu0 %375
    %v377 = vsel %vm148, %v137, 0
    %v379 = vsel %vm148, %v376, 0
    %381 = vmatprep.subr.mxu0 0.0
    %382 = vmatpush1.xpose.msra.mxu0 0.0
    %383 = vmatprep.subr.mxu0 0.0
    %384 = vmatpush1.xpose.msra.mxu0 0.0
    %385 = vmatprep.subr.mxu0 0.0
    %386 = vmatpush1.xpose.msra.mxu0 0.0
    %387 = vmatprep.subr.mxu0 0.0
    %388 = vmatpush1.xpose.msra.mxu0 0.0
    %389 = vmatprep.subr.mxu0 0.0
    %390 = vmatpush1.xpose.msra.mxu0 0.0
    %391 = vmatprep.subr.mxu0 0.0
    %392 = vmatpush1.xpose.msra.mxu0 0.0
    %393 = vmatprep.subr.mxu0 0.0
    %394 = vmatpush1.xpose.msra.mxu0 0.0
    %395 = vmatprep.subr.mxu0 0.0
    %396 = vmatpush1.xpose.msra.mxu0 0.0
    %397 = vmatprep.subr.mxu0 0.0
    %398 = vmatpush1.xpose.msra.mxu0 0.0
    %399 = vmatprep.subr.mxu0 0.0
    %400 = vmatpush1.xpose.msra.mxu0 0.0
    %401 = vmatprep.subr.mxu0 0.0
    %402 = vmatpush1.xpose.msra.mxu0 0.0
    %403 = vmatprep.subr.mxu0 0.0
    %404 = vmatpush1.xpose.msra.mxu0 0.0
    %405 = vmatprep.subr.mxu0 0.0
    %406 = vmatpush1.xpose.msra.mxu0 0.0
    %407 = vmatprep.subr.mxu0 0.0
    %408 = vmatpush1.xpose.msra.mxu0 0.0
    %409 = vmatprep.subr.mxu0 0.0
    %410 = vmatpush1.xpose.msra.mxu0 0.0
    %411 = vmatprep.subr.mxu0 0.0
    %412 = vmatpush1.xpose.msra.mxu0 %v379
    %413 = vmatprep.subr.mxu0 0.0
    %414 = vmatpush2.xpose.msra.mxu0 0.0
    %415 = vmatprep.subr.mxu0 0.0
    %416 = vmatpush2.xpose.msra.mxu0 0.0
    %417 = vmatprep.subr.mxu0 0.0
    %418 = vmatpush2.xpose.msra.mxu0 0.0
    %419 = vmatprep.subr.mxu0 0.0
    %420 = vmatpush2.xpose.msra.mxu0 0.0
    %421 = vmatprep.subr.mxu0 0.0
    %422 = vmatpush2.xpose.msra.mxu0 0.0
    %423 = vmatprep.subr.mxu0 0.0
    %424 = vmatpush2.xpose.msra.mxu0 0.0
    %425 = vmatprep.subr.mxu0 0.0
    %426 = vmatpush2.xpose.msra.mxu0 0.0
    %427 = vmatprep.subr.mxu0 0.0
    %428 = vmatpush2.xpose.msra.mxu0 0.0
    %429 = vmatprep.subr.mxu0 0.0
    %430 = vmatpush2.xpose.msra.mxu0 0.0
    %431 = vmatprep.subr.mxu0 0.0
    %432 = vmatpush2.xpose.msra.mxu0 0.0
    %433 = vmatprep.subr.mxu0 0.0
    %434 = vmatpush2.xpose.msra.mxu0 0.0
    %435 = vmatprep.subr.mxu0 0.0
    %436 = vmatpush2.xpose.msra.mxu0 0.0
    %437 = vmatprep.subr.mxu0 0.0
    %438 = vmatpush2.xpose.msra.mxu0 0.0
    %439 = vmatprep.subr.mxu0 0.0
    %440 = vmatpush2.xpose.msra.mxu0 0.0
    %441 = vmatprep.subr.mxu0 0.0
    %442 = vmatpush2.xpose.msra.mxu0 0.0
    %443 = vmatprep.subr.mxu0 0.0
    %444 = vmatpush2.xpose.msra.mxu0 0.0
    %445 = vmatprep.mubr.f32.mxu0 0.0
    %446 = vmatmul.mubr.f32.gmra.mxu0 %v377
    %v447 = vpop.f32.mrf.mxu0
    %v448 = vadd.f32 0.0, %v447
    %v449 = vpop.f32.mrf.mxu0
    %450 = vdwg.mxu0
    %451 = vrot.lane.b32.xlu0 %v139, 96
    %v452 = vpop.permute.xlu0 %451
    %v453 = vsel %vm148, %v139, 0
    %v455 = vsel %vm148, %v452, 0
    %457 = vmatprep.subr.mxu0 0.0
    %458 = vmatpush1.xpose.msra.mxu0 0.0
    %459 = vmatprep.subr.mxu0 0.0
    %460 = vmatpush1.xpose.msra.mxu0 0.0
    %461 = vmatprep.subr.mxu0 0.0
    %462 = vmatpush1.xpose.msra.mxu0 0.0
    %463 = vmatprep.subr.mxu0 0.0
    %464 = vmatpush1.xpose.msra.mxu0 0.0
    %465 = vmatprep.subr.mxu0 0.0
    %466 = vmatpush1.xpose.msra.mxu0 0.0
    %467 = vmatprep.subr.mxu0 0.0
    %468 = vmatpush1.xpose.msra.mxu0 0.0
    %469 = vmatprep.subr.mxu0 0.0
    %470 = vmatpush1.xpose.msra.mxu0 0.0
    %471 = vmatprep.subr.mxu0 0.0
    %472 = vmatpush1.xpose.msra.mxu0 0.0
    %473 = vmatprep.subr.mxu0 0.0
    %474 = vmatpush1.xpose.msra.mxu0 0.0
    %475 = vmatprep.subr.mxu0 0.0
    %476 = vmatpush1.xpose.msra.mxu0 0.0
    %477 = vmatprep.subr.mxu0 0.0
    %478 = vmatpush1.xpose.msra.mxu0 0.0
    %479 = vmatprep.subr.mxu0 0.0
    %480 = vmatpush1.xpose.msra.mxu0 0.0
    %481 = vmatprep.subr.mxu0 0.0
    %482 = vmatpush1.xpose.msra.mxu0 0.0
    %483 = vmatprep.subr.mxu0 0.0
    %484 = vmatpush1.xpose.msra.mxu0 0.0
    %485 = vmatprep.subr.mxu0 0.0
    %486 = vmatpush1.xpose.msra.mxu0 0.0
    %487 = vmatprep.subr.mxu0 0.0
    %488 = vmatpush1.xpose.msra.mxu0 %v455
    %489 = vmatprep.subr.mxu0 0.0
    %490 = vmatpush2.xpose.msra.mxu0 0.0
    %491 = vmatprep.subr.mxu0 0.0
    %492 = vmatpush2.xpose.msra.mxu0 0.0
    %493 = vmatprep.subr.mxu0 0.0
    %494 = vmatpush2.xpose.msra.mxu0 0.0
    %495 = vmatprep.subr.mxu0 0.0
    %496 = vmatpush2.xpose.msra.mxu0 0.0
    %497 = vmatprep.subr.mxu0 0.0
    %498 = vmatpush2.xpose.msra.mxu0 0.0
    %499 = vmatprep.subr.mxu0 0.0
    %500 = vmatpush2.xpose.msra.mxu0 0.0
    %501 = vmatprep.subr.mxu0 0.0
    %502 = vmatpush2.xpose.msra.mxu0 0.0
    %503 = vmatprep.subr.mxu0 0.0
    %504 = vmatpush2.xpose.msra.mxu0 0.0
    %505 = vmatprep.subr.mxu0 0.0
    %506 = vmatpush2.xpose.msra.mxu0 0.0
    %507 = vmatprep.subr.mxu0 0.0
    %508 = vmatpush2.xpose.msra.mxu0 0.0
    %509 = vmatprep.subr.mxu0 0.0
    %510 = vmatpush2.xpose.msra.mxu0 0.0
    %511 = vmatprep.subr.mxu0 0.0
    %512 = vmatpush2.xpose.msra.mxu0 0.0
    %513 = vmatprep.subr.mxu0 0.0
    %514 = vmatpush2.xpose.msra.mxu0 0.0
    %515 = vmatprep.subr.mxu0 0.0
    %516 = vmatpush2.xpose.msra.mxu0 0.0
    %517 = vmatprep.subr.mxu0 0.0
    %518 = vmatpush2.xpose.msra.mxu0 0.0
    %519 = vmatprep.subr.mxu0 0.0
    %520 = vmatpush2.xpose.msra.mxu0 0.0
    %521 = vmatprep.mubr.f32.mxu0 0.0
    %522 = vmatmul.mubr.f32.gmra.mxu0 %v453
    %v523 = vpop.f32.mrf.mxu0
    %v524 = vadd.f32 0.0, %v523
    %v525 = vpop.f32.mrf.mxu0
    %526 = vdwg.mxu0
    %527 = vrot.lane.b32.xlu0 %v141, 96
    %v528 = vpop.permute.xlu0 %527
    %v529 = vsel %vm148, %v141, 0
    %v531 = vsel %vm148, %v528, 0
    %533 = vmatprep.subr.mxu0 0.0
    %534 = vmatpush1.xpose.msra.mxu0 0.0
    %535 = vmatprep.subr.mxu0 0.0
    %536 = vmatpush1.xpose.msra.mxu0 0.0
    %537 = vmatprep.subr.mxu0 0.0
    %538 = vmatpush1.xpose.msra.mxu0 0.0
    %539 = vmatprep.subr.mxu0 0.0
    %540 = vmatpush1.xpose.msra.mxu0 0.0
    %541 = vmatprep.subr.mxu0 0.0
    %542 = vmatpush1.xpose.msra.mxu0 0.0
    %543 = vmatprep.subr.mxu0 0.0
    %544 = vmatpush1.xpose.msra.mxu0 0.0
    %545 = vmatprep.subr.mxu0 0.0
    %546 = vmatpush1.xpose.msra.mxu0 0.0
    %547 = vmatprep.subr.mxu0 0.0
    %548 = vmatpush1.xpose.msra.mxu0 0.0
    %549 = vmatprep.subr.mxu0 0.0
    %550 = vmatpush1.xpose.msra.mxu0 0.0
    %551 = vmatprep.subr.mxu0 0.0
    %552 = vmatpush1.xpose.msra.mxu0 0.0
    %553 = vmatprep.subr.mxu0 0.0
    %554 = vmatpush1.xpose.msra.mxu0 0.0
    %555 = vmatprep.subr.mxu0 0.0
    %556 = vmatpush1.xpose.msra.mxu0 0.0
    %557 = vmatprep.subr.mxu0 0.0
    %558 = vmatpush1.xpose.msra.mxu0 0.0
    %559 = vmatprep.subr.mxu0 0.0
    %560 = vmatpush1.xpose.msra.mxu0 0.0
    %561 = vmatprep.subr.mxu0 0.0
    %562 = vmatpush1.xpose.msra.mxu0 0.0
    %563 = vmatprep.subr.mxu0 0.0
    %564 = vmatpush1.xpose.msra.mxu0 %v531
    %565 = vmatprep.subr.mxu0 0.0
    %566 = vmatpush2.xpose.msra.mxu0 0.0
    %567 = vmatprep.subr.mxu0 0.0
    %568 = vmatpush2.xpose.msra.mxu0 0.0
    %569 = vmatprep.subr.mxu0 0.0
    %570 = vmatpush2.xpose.msra.mxu0 0.0
    %571 = vmatprep.subr.mxu0 0.0
    %572 = vmatpush2.xpose.msra.mxu0 0.0
    %573 = vmatprep.subr.mxu0 0.0
    %574 = vmatpush2.xpose.msra.mxu0 0.0
    %575 = vmatprep.subr.mxu0 0.0
    %576 = vmatpush2.xpose.msra.mxu0 0.0
    %577 = vmatprep.subr.mxu0 0.0
    %578 = vmatpush2.xpose.msra.mxu0 0.0
    %579 = vmatprep.subr.mxu0 0.0
    %580 = vmatpush2.xpose.msra.mxu0 0.0
    %581 = vmatprep.subr.mxu0 0.0
    %582 = vmatpush2.xpose.msra.mxu0 0.0
    %583 = vmatprep.subr.mxu0 0.0
    %584 = vmatpush2.xpose.msra.mxu0 0.0
    %585 = vmatprep.subr.mxu0 0.0
    %586 = vmatpush2.xpose.msra.mxu0 0.0
    %587 = vmatprep.subr.mxu0 0.0
    %588 = vmatpush2.xpose.msra.mxu0 0.0
    %589 = vmatprep.subr.mxu0 0.0
    %590 = vmatpush2.xpose.msra.mxu0 0.0
    %591 = vmatprep.subr.mxu0 0.0
    %592 = vmatpush2.xpose.msra.mxu0 0.0
    %593 = vmatprep.subr.mxu0 0.0
    %594 = vmatpush2.xpose.msra.mxu0 0.0
    %595 = vmatprep.subr.mxu0 0.0
    %596 = vmatpush2.xpose.msra.mxu0 0.0
    %597 = vmatprep.mubr.f32.mxu0 0.0
    %598 = vmatmul.mubr.f32.gmra.mxu0 %v529
    %v599 = vpop.f32.mrf.mxu0
    %v600 = vadd.f32 0.0, %v599
    %v601 = vpop.f32.mrf.mxu0
    %602 = vdwg.mxu0
    %603 = vrot.lane.b32.xlu0 %v143, 96
    %v604 = vpop.permute.xlu0 %603
    %v605 = vsel %vm148, %v143, 0
    %v607 = vsel %vm148, %v604, 0
    %609 = vmatprep.subr.mxu0 0.0
    %610 = vmatpush1.xpose.msra.mxu0 0.0
    %611 = vmatprep.subr.mxu0 0.0
    %612 = vmatpush1.xpose.msra.mxu0 0.0
    %613 = vmatprep.subr.mxu0 0.0
    %614 = vmatpush1.xpose.msra.mxu0 0.0
    %615 = vmatprep.subr.mxu0 0.0
    %616 = vmatpush1.xpose.msra.mxu0 0.0
    %617 = vmatprep.subr.mxu0 0.0
    %618 = vmatpush1.xpose.msra.mxu0 0.0
    %619 = vmatprep.subr.mxu0 0.0
    %620 = vmatpush1.xpose.msra.mxu0 0.0
    %621 = vmatprep.subr.mxu0 0.0
    %622 = vmatpush1.xpose.msra.mxu0 0.0
    %623 = vmatprep.subr.mxu0 0.0
    %624 = vmatpush1.xpose.msra.mxu0 0.0
    %625 = vmatprep.subr.mxu0 0.0
    %626 = vmatpush1.xpose.msra.mxu0 0.0
    %627 = vmatprep.subr.mxu0 0.0
    %628 = vmatpush1.xpose.msra.mxu0 0.0
    %629 = vmatprep.subr.mxu0 0.0
    %630 = vmatpush1.xpose.msra.mxu0 0.0
    %631 = vmatprep.subr.mxu0 0.0
    %632 = vmatpush1.xpose.msra.mxu0 0.0
    %633 = vmatprep.subr.mxu0 0.0
    %634 = vmatpush1.xpose.msra.mxu0 0.0
    %635 = vmatprep.subr.mxu0 0.0
    %636 = vmatpush1.xpose.msra.mxu0 0.0
    %637 = vmatprep.subr.mxu0 0.0
    %638 = vmatpush1.xpose.msra.mxu0 0.0
    %639 = vmatprep.subr.mxu0 0.0
    %640 = vmatpush1.xpose.msra.mxu0 %v607
    %641 = vmatprep.subr.mxu0 0.0
    %642 = vmatpush2.xpose.msra.mxu0 0.0
    %643 = vmatprep.subr.mxu0 0.0
    %644 = vmatpush2.xpose.msra.mxu0 0.0
    %645 = vmatprep.subr.mxu0 0.0
    %646 = vmatpush2.xpose.msra.mxu0 0.0
    %647 = vmatprep.subr.mxu0 0.0
    %648 = vmatpush2.xpose.msra.mxu0 0.0
    %649 = vmatprep.subr.mxu0 0.0
    %650 = vmatpush2.xpose.msra.mxu0 0.0
    %651 = vmatprep.subr.mxu0 0.0
    %652 = vmatpush2.xpose.msra.mxu0 0.0
    %653 = vmatprep.subr.mxu0 0.0
    %654 = vmatpush2.xpose.msra.mxu0 0.0
    %655 = vmatprep.subr.mxu0 0.0
    %656 = vmatpush2.xpose.msra.mxu0 0.0
    %657 = vmatprep.subr.mxu0 0.0
    %658 = vmatpush2.xpose.msra.mxu0 0.0
    %659 = vmatprep.subr.mxu0 0.0
    %660 = vmatpush2.xpose.msra.mxu0 0.0
    %661 = vmatprep.subr.mxu0 0.0
    %662 = vmatpush2.xpose.msra.mxu0 0.0
    %663 = vmatprep.subr.mxu0 0.0
    %664 = vmatpush2.xpose.msra.mxu0 0.0
    %665 = vmatprep.subr.mxu0 0.0
    %666 = vmatpush2.xpose.msra.mxu0 0.0
    %667 = vmatprep.subr.mxu0 0.0
    %668 = vmatpush2.xpose.msra.mxu0 0.0
    %669 = vmatprep.subr.mxu0 0.0
    %670 = vmatpush2.xpose.msra.mxu0 0.0
    %671 = vmatprep.subr.mxu0 0.0
    %672 = vmatpush2.xpose.msra.mxu0 0.0
    %673 = vmatprep.mubr.f32.mxu0 0.0
    %674 = vmatmul.mubr.f32.gmra.mxu0 %v605
    %v675 = vpop.f32.mrf.mxu0
    %v676 = vadd.f32 0.0, %v675
    %v677 = vpop.f32.mrf.mxu0
    %678 = vdwg.mxu0
    %679 = vrot.lane.b32.xlu0 %v145, 96
    %v680 = vpop.permute.xlu0 %679
    %v681 = vsel %vm148, %v145, 0
    %v683 = vsel %vm148, %v680, 0
    %685 = vmatprep.subr.mxu0 0.0
    %686 = vmatpush1.xpose.msra.mxu0 0.0
    %687 = vmatprep.subr.mxu0 0.0
    %688 = vmatpush1.xpose.msra.mxu0 0.0
    %689 = vmatprep.subr.mxu0 0.0
    %690 = vmatpush1.xpose.msra.mxu0 0.0
    %691 = vmatprep.subr.mxu0 0.0
    %692 = vmatpush1.xpose.msra.mxu0 0.0
    %693 = vmatprep.subr.mxu0 0.0
    %694 = vmatpush1.xpose.msra.mxu0 0.0
    %695 = vmatprep.subr.mxu0 0.0
    %696 = vmatpush1.xpose.msra.mxu0 0.0
    %697 = vmatprep.subr.mxu0 0.0
    %698 = vmatpush1.xpose.msra.mxu0 0.0
    %699 = vmatprep.subr.mxu0 0.0
    %700 = vmatpush1.xpose.msra.mxu0 0.0
    %701 = vmatprep.subr.mxu0 0.0
    %702 = vmatpush1.xpose.msra.mxu0 0.0
    %703 = vmatprep.subr.mxu0 0.0
    %704 = vmatpush1.xpose.msra.mxu0 0.0
    %705 = vmatprep.subr.mxu0 0.0
    %706 = vmatpush1.xpose.msra.mxu0 0.0
    %707 = vmatprep.subr.mxu0 0.0
    %708 = vmatpush1.xpose.msra.mxu0 0.0
    %709 = vmatprep.subr.mxu0 0.0
    %710 = vmatpush1.xpose.msra.mxu0 0.0
    %711 = vmatprep.subr.mxu0 0.0
    %712 = vmatpush1.xpose.msra.mxu0 0.0
    %713 = vmatprep.subr.mxu0 0.0
    %714 = vmatpush1.xpose.msra.mxu0 0.0
    %715 = vmatprep.subr.mxu0 0.0
    %716 = vmatpush1.xpose.msra.mxu0 %v683
    %717 = vmatprep.subr.mxu0 0.0
    %718 = vmatpush2.xpose.msra.mxu0 0.0
    %719 = vmatprep.subr.mxu0 0.0
    %720 = vmatpush2.xpose.msra.mxu0 0.0
    %721 = vmatprep.subr.mxu0 0.0
    %722 = vmatpush2.xpose.msra.mxu0 0.0
    %723 = vmatprep.subr.mxu0 0.0
    %724 = vmatpush2.xpose.msra.mxu0 0.0
    %725 = vmatprep.subr.mxu0 0.0
    %726 = vmatpush2.xpose.msra.mxu0 0.0
    %727 = vmatprep.subr.mxu0 0.0
    %728 = vmatpush2.xpose.msra.mxu0 0.0
    %729 = vmatprep.subr.mxu0 0.0
    %730 = vmatpush2.xpose.msra.mxu0 0.0
    %731 = vmatprep.subr.mxu0 0.0
    %732 = vmatpush2.xpose.msra.mxu0 0.0
    %733 = vmatprep.subr.mxu0 0.0
    %734 = vmatpush2.xpose.msra.mxu0 0.0
    %735 = vmatprep.subr.mxu0 0.0
    %736 = vmatpush2.xpose.msra.mxu0 0.0
    %737 = vmatprep.subr.mxu0 0.0
    %738 = vmatpush2.xpose.msra.mxu0 0.0
    %739 = vmatprep.subr.mxu0 0.0
    %740 = vmatpush2.xpose.msra.mxu0 0.0
    %741 = vmatprep.subr.mxu0 0.0
    %742 = vmatpush2.xpose.msra.mxu0 0.0
    %743 = vmatprep.subr.mxu0 0.0
    %744 = vmatpush2.xpose.msra.mxu0 0.0
    %745 = vmatprep.subr.mxu0 0.0
    %746 = vmatpush2.xpose.msra.mxu0 0.0
    %747 = vmatprep.subr.mxu0 0.0
    %748 = vmatpush2.xpose.msra.mxu0 0.0
    %749 = vmatprep.mubr.f32.mxu0 0.0
    %750 = vmatmul.mubr.f32.gmra.mxu0 %v681
    %v751 = vpop.f32.mrf.mxu0
    %v752 = vadd.f32 0.0, %v751
    %v753 = vpop.f32.mrf.mxu0
    %754 = vdwg.mxu0
    %v755 = vsel %vm148, %v220, -inf
    %756 = vmax.xlane.f32.xlu0 %v755
    %v757 = vpop.xlane.xlu0 %756
    %v758 = vsel %vm148, %v296, -inf
    %759 = vmax.xlane.f32.xlu0 %v758
    %v760 = vpop.xlane.xlu0 %759
    %v761 = vsel %vm148, %v372, -inf
    %762 = vmax.xlane.f32.xlu0 %v761
    %v763 = vpop.xlane.xlu0 %762
    %v764 = vsel %vm148, %v448, -inf
    %765 = vmax.xlane.f32.xlu0 %v764
    %v766 = vpop.xlane.xlu0 %765
    %v767 = vsel %vm148, %v524, -inf
    %768 = vmax.xlane.f32.xlu0 %v767
    %v769 = vpop.xlane.xlu0 %768
    %v770 = vsel %vm148, %v600, -inf
    %771 = vmax.xlane.f32.xlu0 %v770
    %v772 = vpop.xlane.xlu0 %771
    %v773 = vsel %vm148, %v676, -inf
    %774 = vmax.xlane.f32.xlu0 %v773
    %v775 = vpop.xlane.xlu0 %774
    %v776 = vsel %vm148, %v752, -inf
    %777 = vmax.xlane.f32.xlu0 %v776
    %v778 = vpop.xlane.xlu0 %777
    %v779 = vsub.f32 %v220, %v757
    %v780 = vsub.f32 %v296, %v760
    %v781 = vsub.f32 %v372, %v763
    %v782 = vsub.f32 %v448, %v766
    %v783 = vsub.f32 %v524, %v769
    %v784 = vsub.f32 %v600, %v772
    %v785 = vsub.f32 %v676, %v775
    %v786 = vsub.f32 %v752, %v778
    %v787 = vmul.f32 %v779, 1.442695
    %v788 = vpow.pop %v787
    %v789 = vmul.f32 %v780, 1.442695
    %v790 = vpow.pop %v789
    %v791 = vmul.f32 %v781, 1.442695
    %v792 = vpow.pop %v791
    %v793 = vmul.f32 %v782, 1.442695
    %v794 = vpow.pop %v793
    %v795 = vmul.f32 %v783, 1.442695
    %v796 = vpow.pop %v795
    %v797 = vmul.f32 %v784, 1.442695
    %v798 = vpow.pop %v797
    %v799 = vmul.f32 %v785, 1.442695
    %v800 = vpow.pop %v799
    %v801 = vmul.f32 %v786, 1.442695
    %v802 = vpow.pop %v801
    %v803 = vsel %vm148, %v788, 0.0
    %804 = vadd.xlane.f32.xlu0 %v803
    %v805 = vpop.xlane.xlu0 %804
    %v806 = vsel %vm148, %v790, 0.0
    %807 = vadd.xlane.f32.xlu0 %v806
    %v808 = vpop.xlane.xlu0 %807
    %v809 = vsel %vm148, %v792, 0.0
    %810 = vadd.xlane.f32.xlu0 %v809
    %v811 = vpop.xlane.xlu0 %810
    %v812 = vsel %vm148, %v794, 0.0
    %813 = vadd.xlane.f32.xlu0 %v812
    %v814 = vpop.xlane.xlu0 %813
    %v815 = vsel %vm148, %v796, 0.0
    %816 = vadd.xlane.f32.xlu0 %v815
    %v817 = vpop.xlane.xlu0 %816
    %v818 = vsel %vm148, %v798, 0.0
    %819 = vadd.xlane.f32.xlu0 %v818
    %v820 = vpop.xlane.xlu0 %819
    %v821 = vsel %vm148, %v800, 0.0
    %822 = vadd.xlane.f32.xlu0 %v821
    %v823 = vpop.xlane.xlu0 %822
    %v824 = vsel %vm148, %v802, 0.0
    %825 = vadd.xlane.f32.xlu0 %v824
    %v826 = vpop.xlane.xlu0 %825
    %v827 = vrcp.pop %v805
    %v828 = vrcp.pop %v808
    %v829 = vrcp.pop %v811
    %v830 = vrcp.pop %v814
    %v831 = vrcp.pop %v817
    %v832 = vrcp.pop %v820
    %v833 = vrcp.pop %v823
    %v834 = vrcp.pop %v826
    %v835 = vmul.f32 %v788, %v827
    %v836 = vmul.f32 %v790, %v828
    %v837 = vmul.f32 %v792, %v829
    %v838 = vmul.f32 %v794, %v830
    %v839 = vmul.f32 %v796, %v831
    %v840 = vmul.f32 %v798, %v832
    %v841 = vmul.f32 %v800, %v833
    %v842 = vmul.f32 %v802, %v834
    %843 = vrot.lane.b32.xlu0 %v124, 64
    %v844 = vpop.permute.xlu0 %843
    %v847 = vsel %vm148, %v835, 0
    %849 = vmatprep.subr.mxu0 0.0
    %850 = vmatpush1.msra.mxu0 0.0
    %851 = vmatprep.subr.mxu0 0.0
    %852 = vmatpush1.msra.mxu0 0.0
    %853 = vmatprep.subr.mxu0 0.0
    %854 = vmatpush1.msra.mxu0 0.0
    %855 = vmatprep.subr.mxu0 0.0
    %856 = vmatpush1.msra.mxu0 0.0
    %857 = vmatprep.subr.mxu0 0.0
    %858 = vmatpush1.msra.mxu0 0.0
    %859 = vmatprep.subr.mxu0 0.0
    %860 = vmatpush1.msra.mxu0 0.0
    %861 = vmatprep.subr.mxu0 0.0
    %862 = vmatpush1.msra.mxu0 0.0
    %863 = vmatprep.subr.mxu0 0.0
    %864 = vmatpush1.msra.mxu0 0.0
    %865 = vmatprep.subr.mxu0 0.0
    %866 = vmatpush1.msra.mxu0 0.0
    %867 = vmatprep.subr.mxu0 0.0
    %868 = vmatpush1.msra.mxu0 0.0
    %869 = vmatprep.subr.mxu0 0.0
    %870 = vmatpush1.msra.mxu0 0.0
    %871 = vmatprep.subr.mxu0 0.0
    %872 = vmatpush1.msra.mxu0 0.0
    %873 = vmatprep.subr.mxu0 0.0
    %874 = vmatpush1.msra.mxu0 0.0
    %875 = vmatprep.subr.mxu0 0.0
    %876 = vmatpush1.msra.mxu0 0.0
    %877 = vmatprep.subr.mxu0 0.0
    %878 = vmatpush1.msra.mxu0 0.0
    %879 = vmatprep.subr.mxu0 0.0
    %880 = vmatpush1.msra.mxu0 %v844
    %881 = vmatprep.subr.mxu0 0.0
    %882 = vmatpush2.msra.mxu0 0.0
    %883 = vmatprep.subr.mxu0 0.0
    %884 = vmatpush2.msra.mxu0 0.0
    %885 = vmatprep.subr.mxu0 0.0
    %886 = vmatpush2.msra.mxu0 0.0
    %887 = vmatprep.subr.mxu0 0.0
    %888 = vmatpush2.msra.mxu0 0.0
    %889 = vmatprep.subr.mxu0 0.0
    %890 = vmatpush2.msra.mxu0 0.0
    %891 = vmatprep.subr.mxu0 0.0
    %892 = vmatpush2.msra.mxu0 0.0
    %893 = vmatprep.subr.mxu0 0.0
    %894 = vmatpush2.msra.mxu0 0.0
    %895 = vmatprep.subr.mxu0 0.0
    %896 = vmatpush2.msra.mxu0 0.0
    %897 = vmatprep.subr.mxu0 0.0
    %898 = vmatpush2.msra.mxu0 0.0
    %899 = vmatprep.subr.mxu0 0.0
    %900 = vmatpush2.msra.mxu0 0.0
    %901 = vmatprep.subr.mxu0 0.0
    %902 = vmatpush2.msra.mxu0 0.0
    %903 = vmatprep.subr.mxu0 0.0
    %904 = vmatpush2.msra.mxu0 0.0
    %905 = vmatprep.subr.mxu0 0.0
    %906 = vmatpush2.msra.mxu0 0.0
    %907 = vmatprep.subr.mxu0 0.0
    %908 = vmatpush2.msra.mxu0 0.0
    %909 = vmatprep.subr.mxu0 0.0
    %910 = vmatpush2.msra.mxu0 0.0
    %911 = vmatprep.subr.mxu0 0.0
    %912 = vmatpush2.msra.mxu0 0.0
    %913 = vmatprep.mubr.f32.mxu0 0.0
    %914 = vmatmul.mubr.f32.gmra.mxu0 %v847
    %v915 = vpop.f32.mrf.mxu0
    %v916 = vadd.f32 0.0, %v915
    %v917 = vpop.f32.mrf.mxu0
    %918 = vdwg.mxu0
    %919 = vrot.lane.b32.xlu0 %v129, 64
    %v920 = vpop.permute.xlu0 %919
    %v923 = vsel %vm148, %v836, 0
    %925 = vmatprep.subr.mxu0 0.0
    %926 = vmatpush1.msra.mxu0 0.0
    %927 = vmatprep.subr.mxu0 0.0
    %928 = vmatpush1.msra.mxu0 0.0
    %929 = vmatprep.subr.mxu0 0.0
    %930 = vmatpush1.msra.mxu0 0.0
    %931 = vmatprep.subr.mxu0 0.0
    %932 = vmatpush1.msra.mxu0 0.0
    %933 = vmatprep.subr.mxu0 0.0
    %934 = vmatpush1.msra.mxu0 0.0
    %935 = vmatprep.subr.mxu0 0.0
    %936 = vmatpush1.msra.mxu0 0.0
    %937 = vmatprep.subr.mxu0 0.0
    %938 = vmatpush1.msra.mxu0 0.0
    %939 = vmatprep.subr.mxu0 0.0
    %940 = vmatpush1.msra.mxu0 0.0
    %941 = vmatprep.subr.mxu0 0.0
    %942 = vmatpush1.msra.mxu0 0.0
    %943 = vmatprep.subr.mxu0 0.0
    %944 = vmatpush1.msra.mxu0 0.0
    %945 = vmatprep.subr.mxu0 0.0
    %946 = vmatpush1.msra.mxu0 0.0
    %947 = vmatprep.subr.mxu0 0.0
    %948 = vmatpush1.msra.mxu0 0.0
    %949 = vmatprep.subr.mxu0 0.0
    %950 = vmatpush1.msra.mxu0 0.0
    %951 = vmatprep.subr.mxu0 0.0
    %952 = vmatpush1.msra.mxu0 0.0
    %953 = vmatprep.subr.mxu0 0.0
    %954 = vmatpush1.msra.mxu0 0.0
    %955 = vmatprep.subr.mxu0 0.0
    %956 = vmatpush1.msra.mxu0 %v920
    %957 = vmatprep.subr.mxu0 0.0
    %958 = vmatpush2.msra.mxu0 0.0
    %959 = vmatprep.subr.mxu0 0.0
    %960 = vmatpush2.msra.mxu0 0.0
    %961 = vmatprep.subr.mxu0 0.0
    %962 = vmatpush2.msra.mxu0 0.0
    %963 = vmatprep.subr.mxu0 0.0
    %964 = vmatpush2.msra.mxu0 0.0
    %965 = vmatprep.subr.mxu0 0.0
    %966 = vmatpush2.msra.mxu0 0.0
    %967 = vmatprep.subr.mxu0 0.0
    %968 = vmatpush2.msra.mxu0 0.0
    %969 = vmatprep.subr.mxu0 0.0
    %970 = vmatpush2.msra.mxu0 0.0
    %971 = vmatprep.subr.mxu0 0.0
    %972 = vmatpush2.msra.mxu0 0.0
    %973 = vmatprep.subr.mxu0 0.0
    %974 = vmatpush2.msra.mxu0 0.0
    %975 = vmatprep.subr.mxu0 0.0
    %976 = vmatpush2.msra.mxu0 0.0
    %977 = vmatprep.subr.mxu0 0.0
    %978 = vmatpush2.msra.mxu0 0.0
    %979 = vmatprep.subr.mxu0 0.0
    %980 = vmatpush2.msra.mxu0 0.0
    %981 = vmatprep.subr.mxu0 0.0
    %982 = vmatpush2.msra.mxu0 0.0
    %983 = vmatprep.subr.mxu0 0.0
    %984 = vmatpush2.msra.mxu0 0.0
    %985 = vmatprep.subr.mxu0 0.0
    %986 = vmatpush2.msra.mxu0 0.0
    %987 = vmatprep.subr.mxu0 0.0
    %988 = vmatpush2.msra.mxu0 0.0
    %989 = vmatprep.mubr.f32.mxu0 0.0
    %990 = vmatmul.mubr.f32.gmra.mxu0 %v923
    %v991 = vpop.f32.mrf.mxu0
    %v992 = vadd.f32 0.0, %v991
    %v993 = vpop.f32.mrf.mxu0
    %994 = vdwg.mxu0
    %995 = vrot.lane.b32.xlu0 %v135, 64
    %v996 = vpop.permute.xlu0 %995
    %v999 = vsel %vm148, %v837, 0
    %1001 = vmatprep.subr.mxu0 0.0
    %1002 = vmatpush1.msra.mxu0 0.0
    %1003 = vmatprep.subr.mxu0 0.0
    %1004 = vmatpush1.msra.mxu0 0.0
    %1005 = vmatprep.subr.mxu0 0.0
    %1006 = vmatpush1.msra.mxu0 0.0
    %1007 = vmatprep.subr.mxu0 0.0
    %1008 = vmatpush1.msra.mxu0 0.0
    %1009 = vmatprep.subr.mxu0 0.0
    %1010 = vmatpush1.msra.mxu0 0.0
    %1011 = vmatprep.subr.mxu0 0.0
    %1012 = vmatpush1.msra.mxu0 0.0
    %1013 = vmatprep.subr.mxu0 0.0
    %1014 = vmatpush1.msra.mxu0 0.0
    %1015 = vmatprep.subr.mxu0 0.0
    %1016 = vmatpush1.msra.mxu0 0.0
    %1017 = vmatprep.subr.mxu0 0.0
    %1018 = vmatpush1.msra.mxu0 0.0
    %1019 = vmatprep.subr.mxu0 0.0
    %1020 = vmatpush1.msra.mxu0 0.0
    %1021 = vmatprep.subr.mxu0 0.0
    %1022 = vmatpush1.msra.mxu0 0.0
    %1023 = vmatprep.subr.mxu0 0.0
    %1024 = vmatpush1.msra.mxu0 0.0
    %1025 = vmatprep.subr.mxu0 0.0
    %1026 = vmatpush1.msra.mxu0 0.0
    %1027 = vmatprep.subr.mxu0 0.0
    %1028 = vmatpush1.msra.mxu0 0.0
    %1029 = vmatprep.subr.mxu0 0.0
    %1030 = vmatpush1.msra.mxu0 0.0
    %1031 = vmatprep.subr.mxu0 0.0
    %1032 = vmatpush1.msra.mxu0 %v996
    %1033 = vmatprep.subr.mxu0 0.0
    %1034 = vmatpush2.msra.mxu0 0.0
    %1035 = vmatprep.subr.mxu0 0.0
    %1036 = vmatpush2.msra.mxu0 0.0
    %1037 = vmatprep.subr.mxu0 0.0
    %1038 = vmatpush2.msra.mxu0 0.0
    %1039 = vmatprep.subr.mxu0 0.0
    %1040 = vmatpush2.msra.mxu0 0.0
    %1041 = vmatprep.subr.mxu0 0.0
    %1042 = vmatpush2.msra.mxu0 0.0
    %1043 = vmatprep.subr.mxu0 0.0
    %1044 = vmatpush2.msra.mxu0 0.0
    %1045 = vmatprep.subr.mxu0 0.0
    %1046 = vmatpush2.msra.mxu0 0.0
    %1047 = vmatprep.subr.mxu0 0.0
    %1048 = vmatpush2.msra.mxu0 0.0
    %1049 = vmatprep.subr.mxu0 0.0
    %1050 = vmatpush2.msra.mxu0 0.0
    %1051 = vmatprep.subr.mxu0 0.0
    %1052 = vmatpush2.msra.mxu0 0.0
    %1053 = vmatprep.subr.mxu0 0.0
    %1054 = vmatpush2.msra.mxu0 0.0
    %1055 = vmatprep.subr.mxu0 0.0
    %1056 = vmatpush2.msra.mxu0 0.0
    %1057 = vmatprep.subr.mxu0 0.0
    %1058 = vmatpush2.msra.mxu0 0.0
    %1059 = vmatprep.subr.mxu0 0.0
    %1060 = vmatpush2.msra.mxu0 0.0
    %1061 = vmatprep.subr.mxu0 0.0
    %1062 = vmatpush2.msra.mxu0 0.0
    %1063 = vmatprep.subr.mxu0 0.0
    %1064 = vmatpush2.msra.mxu0 0.0
    %1065 = vmatprep.mubr.f32.mxu0 0.0
    %1066 = vmatmul.mubr.f32.gmra.mxu0 %v999
    %v1067 = vpop.f32.mrf.mxu0
    %v1068 = vadd.f32 0.0, %v1067
    %v1069 = vpop.f32.mrf.mxu0
    %1070 = vdwg.mxu0
    %1071 = vrot.lane.b32.xlu0 %v137, 64
    %v1072 = vpop.permute.xlu0 %1071
    %v1075 = vsel %vm148, %v838, 0
    %1077 = vmatprep.subr.mxu0 0.0
    %1078 = vmatpush1.msra.mxu0 0.0
    %1079 = vmatprep.subr.mxu0 0.0
    %1080 = vmatpush1.msra.mxu0 0.0
    %1081 = vmatprep.subr.mxu0 0.0
    %1082 = vmatpush1.msra.mxu0 0.0
    %1083 = vmatprep.subr.mxu0 0.0
    %1084 = vmatpush1.msra.mxu0 0.0
    %1085 = vmatprep.subr.mxu0 0.0
    %1086 = vmatpush1.msra.mxu0 0.0
    %1087 = vmatprep.subr.mxu0 0.0
    %1088 = vmatpush1.msra.mxu0 0.0
    %1089 = vmatprep.subr.mxu0 0.0
    %1090 = vmatpush1.msra.mxu0 0.0
    %1091 = vmatprep.subr.mxu0 0.0
    %1092 = vmatpush1.msra.mxu0 0.0
    %1093 = vmatprep.subr.mxu0 0.0
    %1094 = vmatpush1.msra.mxu0 0.0
    %1095 = vmatprep.subr.mxu0 0.0
    %1096 = vmatpush1.msra.mxu0 0.0
    %1097 = vmatprep.subr.mxu0 0.0
    %1098 = vmatpush1.msra.mxu0 0.0
    %1099 = vmatprep.subr.mxu0 0.0
    %1100 = vmatpush1.msra.mxu0 0.0
    %1101 = vmatprep.subr.mxu0 0.0
    %1102 = vmatpush1.msra.mxu0 0.0
    %1103 = vmatprep.subr.mxu0 0.0
    %1104 = vmatpush1.msra.mxu0 0.0
    %1105 = vmatprep.subr.mxu0 0.0
    %1106 = vmatpush1.msra.mxu0 0.0
    %1107 = vmatprep.subr.mxu0 0.0
    %1108 = vmatpush1.msra.mxu0 %v1072
    %1109 = vmatprep.subr.mxu0 0.0
    %1110 = vmatpush2.msra.mxu0 0.0
    %1111 = vmatprep.subr.mxu0 0.0
    %1112 = vmatpush2.msra.mxu0 0.0
    %1113 = vmatprep.subr.mxu0 0.0
    %1114 = vmatpush2.msra.mxu0 0.0
    %1115 = vmatprep.subr.mxu0 0.0
    %1116 = vmatpush2.msra.mxu0 0.0
    %1117 = vmatprep.subr.mxu0 0.0
    %1118 = vmatpush2.msra.mxu0 0.0
    %1119 = vmatprep.subr.mxu0 0.0
    %1120 = vmatpush2.msra.mxu0 0.0
    %1121 = vmatprep.subr.mxu0 0.0
    %1122 = vmatpush2.msra.mxu0 0.0
    %1123 = vmatprep.subr.mxu0 0.0
    %1124 = vmatpush2.msra.mxu0 0.0
    %1125 = vmatprep.subr.mxu0 0.0
    %1126 = vmatpush2.msra.mxu0 0.0
    %1127 = vmatprep.subr.mxu0 0.0
    %1128 = vmatpush2.msra.mxu0 0.0
    %1129 = vmatprep.subr.mxu0 0.0
    %1130 = vmatpush2.msra.mxu0 0.0
    %1131 = vmatprep.subr.mxu0 0.0
    %1132 = vmatpush2.msra.mxu0 0.0
    %1133 = vmatprep.subr.mxu0 0.0
    %1134 = vmatpush2.msra.mxu0 0.0
    %1135 = vmatprep.subr.mxu0 0.0
    %1136 = vmatpush2.msra.mxu0 0.0
    %1137 = vmatprep.subr.mxu0 0.0
    %1138 = vmatpush2.msra.mxu0 0.0
    %1139 = vmatprep.subr.mxu0 0.0
    %1140 = vmatpush2.msra.mxu0 0.0
    %1141 = vmatprep.mubr.f32.mxu0 0.0
    %1142 = vmatmul.mubr.f32.gmra.mxu0 %v1075
    %v1143 = vpop.f32.mrf.mxu0
    %v1144 = vadd.f32 0.0, %v1143
    %v1145 = vpop.f32.mrf.mxu0
    %1146 = vdwg.mxu0
    %1147 = vrot.lane.b32.xlu0 %v139, 64
    %v1148 = vpop.permute.xlu0 %1147
    %v1151 = vsel %vm148, %v839, 0
    %1153 = vmatprep.subr.mxu0 0.0
    %1154 = vmatpush1.msra.mxu0 0.0
    %1155 = vmatprep.subr.mxu0 0.0
    %1156 = vmatpush1.msra.mxu0 0.0
    %1157 = vmatprep.subr.mxu0 0.0
    %1158 = vmatpush1.msra.mxu0 0.0
    %1159 = vmatprep.subr.mxu0 0.0
    %1160 = vmatpush1.msra.mxu0 0.0
    %1161 = vmatprep.subr.mxu0 0.0
    %1162 = vmatpush1.msra.mxu0 0.0
    %1163 = vmatprep.subr.mxu0 0.0
    %1164 = vmatpush1.msra.mxu0 0.0
    %1165 = vmatprep.subr.mxu0 0.0
    %1166 = vmatpush1.msra.mxu0 0.0
    %1167 = vmatprep.subr.mxu0 0.0
    %1168 = vmatpush1.msra.mxu0 0.0
    %1169 = vmatprep.subr.mxu0 0.0
    %1170 = vmatpush1.msra.mxu0 0.0
    %1171 = vmatprep.subr.mxu0 0.0
    %1172 = vmatpush1.msra.mxu0 0.0
    %1173 = vmatprep.subr.mxu0 0.0
    %1174 = vmatpush1.msra.mxu0 0.0
    %1175 = vmatprep.subr.mxu0 0.0
    %1176 = vmatpush1.msra.mxu0 0.0
    %1177 = vmatprep.subr.mxu0 0.0
    %1178 = vmatpush1.msra.mxu0 0.0
    %1179 = vmatprep.subr.mxu0 0.0
    %1180 = vmatpush1.msra.mxu0 0.0
    %1181 = vmatprep.subr.mxu0 0.0
    %1182 = vmatpush1.msra.mxu0 0.0
    %1183 = vmatprep.subr.mxu0 0.0
    %1184 = vmatpush1.msra.mxu0 %v1148
    %1185 = vmatprep.subr.mxu0 0.0
    %1186 = vmatpush2.msra.mxu0 0.0
    %1187 = vmatprep.subr.mxu0 0.0
    %1188 = vmatpush2.msra.mxu0 0.0
    %1189 = vmatprep.subr.mxu0 0.0
    %1190 = vmatpush2.msra.mxu0 0.0
    %1191 = vmatprep.subr.mxu0 0.0
    %1192 = vmatpush2.msra.mxu0 0.0
    %1193 = vmatprep.subr.mxu0 0.0
    %1194 = vmatpush2.msra.mxu0 0.0
    %1195 = vmatprep.subr.mxu0 0.0
    %1196 = vmatpush2.msra.mxu0 0.0
    %1197 = vmatprep.subr.mxu0 0.0
    %1198 = vmatpush2.msra.mxu0 0.0
    %1199 = vmatprep.subr.mxu0 0.0
    %1200 = vmatpush2.msra.mxu0 0.0
    %1201 = vmatprep.subr.mxu0 0.0
    %1202 = vmatpush2.msra.mxu0 0.0
    %1203 = vmatprep.subr.mxu0 0.0
    %1204 = vmatpush2.msra.mxu0 0.0
    %1205 = vmatprep.subr.mxu0 0.0
    %1206 = vmatpush2.msra.mxu0 0.0
    %1207 = vmatprep.subr.mxu0 0.0
    %1208 = vmatpush2.msra.mxu0 0.0
    %1209 = vmatprep.subr.mxu0 0.0
    %1210 = vmatpush2.msra.mxu0 0.0
    %1211 = vmatprep.subr.mxu0 0.0
    %1212 = vmatpush2.msra.mxu0 0.0
    %1213 = vmatprep.subr.mxu0 0.0
    %1214 = vmatpush2.msra.mxu0 0.0
    %1215 = vmatprep.subr.mxu0 0.0
    %1216 = vmatpush2.msra.mxu0 0.0
    %1217 = vmatprep.mubr.f32.mxu0 0.0
    %1218 = vmatmul.mubr.f32.gmra.mxu0 %v1151
    %v1219 = vpop.f32.mrf.mxu0
    %v1220 = vadd.f32 0.0, %v1219
    %v1221 = vpop.f32.mrf.mxu0
    %1222 = vdwg.mxu0
    %1223 = vrot.lane.b32.xlu0 %v141, 64
    %v1224 = vpop.permute.xlu0 %1223
    %v1227 = vsel %vm148, %v840, 0
    %1229 = vmatprep.subr.mxu0 0.0
    %1230 = vmatpush1.msra.mxu0 0.0
    %1231 = vmatprep.subr.mxu0 0.0
    %1232 = vmatpush1.msra.mxu0 0.0
    %1233 = vmatprep.subr.mxu0 0.0
    %1234 = vmatpush1.msra.mxu0 0.0
    %1235 = vmatprep.subr.mxu0 0.0
    %1236 = vmatpush1.msra.mxu0 0.0
    %1237 = vmatprep.subr.mxu0 0.0
    %1238 = vmatpush1.msra.mxu0 0.0
    %1239 = vmatprep.subr.mxu0 0.0
    %1240 = vmatpush1.msra.mxu0 0.0
    %1241 = vmatprep.subr.mxu0 0.0
    %1242 = vmatpush1.msra.mxu0 0.0
    %1243 = vmatprep.subr.mxu0 0.0
    %1244 = vmatpush1.msra.mxu0 0.0
    %1245 = vmatprep.subr.mxu0 0.0
    %1246 = vmatpush1.msra.mxu0 0.0
    %1247 = vmatprep.subr.mxu0 0.0
    %1248 = vmatpush1.msra.mxu0 0.0
    %1249 = vmatprep.subr.mxu0 0.0
    %1250 = vmatpush1.msra.mxu0 0.0
    %1251 = vmatprep.subr.mxu0 0.0
    %1252 = vmatpush1.msra.mxu0 0.0
    %1253 = vmatprep.subr.mxu0 0.0
    %1254 = vmatpush1.msra.mxu0 0.0
    %1255 = vmatprep.subr.mxu0 0.0
    %1256 = vmatpush1.msra.mxu0 0.0
    %1257 = vmatprep.subr.mxu0 0.0
    %1258 = vmatpush1.msra.mxu0 0.0
    %1259 = vmatprep.subr.mxu0 0.0
    %1260 = vmatpush1.msra.mxu0 %v1224
    %1261 = vmatprep.subr.mxu0 0.0
    %1262 = vmatpush2.msra.mxu0 0.0
    %1263 = vmatprep.subr.mxu0 0.0
    %1264 = vmatpush2.msra.mxu0 0.0
    %1265 = vmatprep.subr.mxu0 0.0
    %1266 = vmatpush2.msra.mxu0 0.0
    %1267 = vmatprep.subr.mxu0 0.0
    %1268 = vmatpush2.msra.mxu0 0.0
    %1269 = vmatprep.subr.mxu0 0.0
    %1270 = vmatpush2.msra.mxu0 0.0
    %1271 = vmatprep.subr.mxu0 0.0
    %1272 = vmatpush2.msra.mxu0 0.0
    %1273 = vmatprep.subr.mxu0 0.0
    %1274 = vmatpush2.msra.mxu0 0.0
    %1275 = vmatprep.subr.mxu0 0.0
    %1276 = vmatpush2.msra.mxu0 0.0
    %1277 = vmatprep.subr.mxu0 0.0
    %1278 = vmatpush2.msra.mxu0 0.0
    %1279 = vmatprep.subr.mxu0 0.0
    %1280 = vmatpush2.msra.mxu0 0.0
    %1281 = vmatprep.subr.mxu0 0.0
    %1282 = vmatpush2.msra.mxu0 0.0
    %1283 = vmatprep.subr.mxu0 0.0
    %1284 = vmatpush2.msra.mxu0 0.0
    %1285 = vmatprep.subr.mxu0 0.0
    %1286 = vmatpush2.msra.mxu0 0.0
    %1287 = vmatprep.subr.mxu0 0.0
    %1288 = vmatpush2.msra.mxu0 0.0
    %1289 = vmatprep.subr.mxu0 0.0
    %1290 = vmatpush2.msra.mxu0 0.0
    %1291 = vmatprep.subr.mxu0 0.0
    %1292 = vmatpush2.msra.mxu0 0.0
    %1293 = vmatprep.mubr.f32.mxu0 0.0
    %1294 = vmatmul.mubr.f32.gmra.mxu0 %v1227
    %v1295 = vpop.f32.mrf.mxu0
    %v1296 = vadd.f32 0.0, %v1295
    %v1297 = vpop.f32.mrf.mxu0
    %1298 = vdwg.mxu0
    %1299 = vrot.lane.b32.xlu0 %v143, 64
    %v1300 = vpop.permute.xlu0 %1299
    %v1303 = vsel %vm148, %v841, 0
    %1305 = vmatprep.subr.mxu0 0.0
    %1306 = vmatpush1.msra.mxu0 0.0
    %1307 = vmatprep.subr.mxu0 0.0
    %1308 = vmatpush1.msra.mxu0 0.0
    %1309 = vmatprep.subr.mxu0 0.0
    %1310 = vmatpush1.msra.mxu0 0.0
    %1311 = vmatprep.subr.mxu0 0.0
    %1312 = vmatpush1.msra.mxu0 0.0
    %1313 = vmatprep.subr.mxu0 0.0
    %1314 = vmatpush1.msra.mxu0 0.0
    %1315 = vmatprep.subr.mxu0 0.0
    %1316 = vmatpush1.msra.mxu0 0.0
    %1317 = vmatprep.subr.mxu0 0.0
    %1318 = vmatpush1.msra.mxu0 0.0
    %1319 = vmatprep.subr.mxu0 0.0
    %1320 = vmatpush1.msra.mxu0 0.0
    %1321 = vmatprep.subr.mxu0 0.0
    %1322 = vmatpush1.msra.mxu0 0.0
    %1323 = vmatprep.subr.mxu0 0.0
    %1324 = vmatpush1.msra.mxu0 0.0
    %1325 = vmatprep.subr.mxu0 0.0
    %1326 = vmatpush1.msra.mxu0 0.0
    %1327 = vmatprep.subr.mxu0 0.0
    %1328 = vmatpush1.msra.mxu0 0.0
    %1329 = vmatprep.subr.mxu0 0.0
    %1330 = vmatpush1.msra.mxu0 0.0
    %1331 = vmatprep.subr.mxu0 0.0
    %1332 = vmatpush1.msra.mxu0 0.0
    %1333 = vmatprep.subr.mxu0 0.0
    %1334 = vmatpush1.msra.mxu0 0.0
    %1335 = vmatprep.subr.mxu0 0.0
    %1336 = vmatpush1.msra.mxu0 %v1300
    %1337 = vmatprep.subr.mxu0 0.0
    %1338 = vmatpush2.msra.mxu0 0.0
    %1339 = vmatprep.subr.mxu0 0.0
    %1340 = vmatpush2.msra.mxu0 0.0
    %1341 = vmatprep.subr.mxu0 0.0
    %1342 = vmatpush2.msra.mxu0 0.0
    %1343 = vmatprep.subr.mxu0 0.0
    %1344 = vmatpush2.msra.mxu0 0.0
    %1345 = vmatprep.subr.mxu0 0.0
    %1346 = vmatpush2.msra.mxu0 0.0
    %1347 = vmatprep.subr.mxu0 0.0
    %1348 = vmatpush2.msra.mxu0 0.0
    %1349 = vmatprep.subr.mxu0 0.0
    %1350 = vmatpush2.msra.mxu0 0.0
    %1351 = vmatprep.subr.mxu0 0.0
    %1352 = vmatpush2.msra.mxu0 0.0
    %1353 = vmatprep.subr.mxu0 0.0
    %1354 = vmatpush2.msra.mxu0 0.0
    %1355 = vmatprep.subr.mxu0 0.0
    %1356 = vmatpush2.msra.mxu0 0.0
    %1357 = vmatprep.subr.mxu0 0.0
    %1358 = vmatpush2.msra.mxu0 0.0
    %1359 = vmatprep.subr.mxu0 0.0
    %1360 = vmatpush2.msra.mxu0 0.0
    %1361 = vmatprep.subr.mxu0 0.0
    %1362 = vmatpush2.msra.mxu0 0.0
    %1363 = vmatprep.subr.mxu0 0.0
    %1364 = vmatpush2.msra.mxu0 0.0
    %1365 = vmatprep.subr.mxu0 0.0
    %1366 = vmatpush2.msra.mxu0 0.0
    %1367 = vmatprep.subr.mxu0 0.0
    %1368 = vmatpush2.msra.mxu0 0.0
    %1369 = vmatprep.mubr.f32.mxu0 0.0
    %1370 = vmatmul.mubr.f32.gmra.mxu0 %v1303
    %v1371 = vpop.f32.mrf.mxu0
    %v1372 = vadd.f32 0.0, %v1371
    %v1373 = vpop.f32.mrf.mxu0
    %1374 = vdwg.mxu0
    %1375 = vrot.lane.b32.xlu0 %v145, 64
    %v1376 = vpop.permute.xlu0 %1375
    %v1379 = vsel %vm148, %v842, 0
    %1381 = vmatprep.subr.mxu0 0.0
    %1382 = vmatpush1.msra.mxu0 0.0
    %1383 = vmatprep.subr.mxu0 0.0
    %1384 = vmatpush1.msra.mxu0 0.0
    %1385 = vmatprep.subr.mxu0 0.0
    %1386 = vmatpush1.msra.mxu0 0.0
    %1387 = vmatprep.subr.mxu0 0.0
    %1388 = vmatpush1.msra.mxu0 0.0
    %1389 = vmatprep.subr.mxu0 0.0
    %1390 = vmatpush1.msra.mxu0 0.0
    %1391 = vmatprep.subr.mxu0 0.0
    %1392 = vmatpush1.msra.mxu0 0.0
    %1393 = vmatprep.subr.mxu0 0.0
    %1394 = vmatpush1.msra.mxu0 0.0
    %1395 = vmatprep.subr.mxu0 0.0
    %1396 = vmatpush1.msra.mxu0 0.0
    %1397 = vmatprep.subr.mxu0 0.0
    %1398 = vmatpush1.msra.mxu0 0.0
    %1399 = vmatprep.subr.mxu0 0.0
    %1400 = vmatpush1.msra.mxu0 0.0
    %1401 = vmatprep.subr.mxu0 0.0
    %1402 = vmatpush1.msra.mxu0 0.0
    %1403 = vmatprep.subr.mxu0 0.0
    %1404 = vmatpush1.msra.mxu0 0.0
    %1405 = vmatprep.subr.mxu0 0.0
    %1406 = vmatpush1.msra.mxu0 0.0
    %1407 = vmatprep.subr.mxu0 0.0
    %1408 = vmatpush1.msra.mxu0 0.0
    %1409 = vmatprep.subr.mxu0 0.0
    %1410 = vmatpush1.msra.mxu0 0.0
    %1411 = vmatprep.subr.mxu0 0.0
    %1412 = vmatpush1.msra.mxu0 %v1376
    %1413 = vmatprep.subr.mxu0 0.0
    %1414 = vmatpush2.msra.mxu0 0.0
    %1415 = vmatprep.subr.mxu0 0.0
    %1416 = vmatpush2.msra.mxu0 0.0
    %1417 = vmatprep.subr.mxu0 0.0
    %1418 = vmatpush2.msra.mxu0 0.0
    %1419 = vmatprep.subr.mxu0 0.0
    %1420 = vmatpush2.msra.mxu0 0.0
    %1421 = vmatprep.subr.mxu0 0.0
    %1422 = vmatpush2.msra.mxu0 0.0
    %1423 = vmatprep.subr.mxu0 0.0
    %1424 = vmatpush2.msra.mxu0 0.0
    %1425 = vmatprep.subr.mxu0 0.0
    %1426 = vmatpush2.msra.mxu0 0.0
    %1427 = vmatprep.subr.mxu0 0.0
    %1428 = vmatpush2.msra.mxu0 0.0
    %1429 = vmatprep.subr.mxu0 0.0
    %1430 = vmatpush2.msra.mxu0 0.0
    %1431 = vmatprep.subr.mxu0 0.0
    %1432 = vmatpush2.msra.mxu0 0.0
    %1433 = vmatprep.subr.mxu0 0.0
    %1434 = vmatpush2.msra.mxu0 0.0
    %1435 = vmatprep.subr.mxu0 0.0
    %1436 = vmatpush2.msra.mxu0 0.0
    %1437 = vmatprep.subr.mxu0 0.0
    %1438 = vmatpush2.msra.mxu0 0.0
    %1439 = vmatprep.subr.mxu0 0.0
    %1440 = vmatpush2.msra.mxu0 0.0
    %1441 = vmatprep.subr.mxu0 0.0
    %1442 = vmatpush2.msra.mxu0 0.0
    %1443 = vmatprep.subr.mxu0 0.0
    %1444 = vmatpush2.msra.mxu0 0.0
    %1445 = vmatprep.mubr.f32.mxu0 0.0
    %1446 = vmatmul.mubr.f32.gmra.mxu0 %v1379
    %v1447 = vpop.f32.mrf.mxu0
    %v1448 = vadd.f32 0.0, %v1447
    %v1449 = vpop.f32.mrf.mxu0
    %1450 = vdwg.mxu0
    %1452 = vrot.lane.b32.xlu0 %v44, 32
    %v1453 = vpop.permute.xlu0 %1452
    %v1456 = vsel %vm148, %v1068, 0
    %v1459 = vsel %vm148, %v1144, 0
    %1461 = vmatprep.subr.mxu0 0.0
    %1462 = vmatpush1.msra.mxu0 0.0
    %1463 = vmatprep.subr.mxu0 0.0
    %1464 = vmatpush1.msra.mxu0 0.0
    %1465 = vmatprep.subr.mxu0 0.0
    %1466 = vmatpush1.msra.mxu0 0.0
    %1467 = vmatprep.subr.mxu0 0.0
    %1468 = vmatpush1.msra.mxu0 0.0
    %1469 = vmatprep.subr.mxu0 0.0
    %1470 = vmatpush1.msra.mxu0 0.0
    %1471 = vmatprep.subr.mxu0 0.0
    %1472 = vmatpush1.msra.mxu0 0.0
    %1473 = vmatprep.subr.mxu0 0.0
    %1474 = vmatpush1.msra.mxu0 0.0
    %1475 = vmatprep.subr.mxu0 0.0
    %1476 = vmatpush1.msra.mxu0 0.0
    %1477 = vmatprep.subr.mxu0 0.0
    %1478 = vmatpush1.msra.mxu0 0.0
    %1479 = vmatprep.subr.mxu0 0.0
    %1480 = vmatpush1.msra.mxu0 0.0
    %1481 = vmatprep.subr.mxu0 0.0
    %1482 = vmatpush1.msra.mxu0 0.0
    %1483 = vmatprep.subr.mxu0 0.0
    %1484 = vmatpush1.msra.mxu0 0.0
    %1485 = vmatprep.subr.mxu0 0.0
    %1486 = vmatpush1.msra.mxu0 0.0
    %1487 = vmatprep.subr.mxu0 0.0
    %1488 = vmatpush1.msra.mxu0 0.0
    %1489 = vmatprep.subr.mxu0 0.0
    %1490 = vmatpush1.msra.mxu0 0.0
    %1491 = vmatprep.subr.mxu0 0.0
    %1492 = vmatpush1.msra.mxu0 %v1453
    %1493 = vmatprep.subr.mxu0 0.0
    %1494 = vmatpush2.msra.mxu0 0.0
    %1495 = vmatprep.subr.mxu0 0.0
    %1496 = vmatpush2.msra.mxu0 0.0
    %1497 = vmatprep.subr.mxu0 0.0
    %1498 = vmatpush2.msra.mxu0 0.0
    %1499 = vmatprep.subr.mxu0 0.0
    %1500 = vmatpush2.msra.mxu0 0.0
    %1501 = vmatprep.subr.mxu0 0.0
    %1502 = vmatpush2.msra.mxu0 0.0
    %1503 = vmatprep.subr.mxu0 0.0
    %1504 = vmatpush2.msra.mxu0 0.0
    %1505 = vmatprep.subr.mxu0 0.0
    %1506 = vmatpush2.msra.mxu0 0.0
    %1507 = vmatprep.subr.mxu0 0.0
    %1508 = vmatpush2.msra.mxu0 0.0
    %1509 = vmatprep.subr.mxu0 0.0
    %1510 = vmatpush2.msra.mxu0 0.0
    %1511 = vmatprep.subr.mxu0 0.0
    %1512 = vmatpush2.msra.mxu0 0.0
    %1513 = vmatprep.subr.mxu0 0.0
    %1514 = vmatpush2.msra.mxu0 0.0
    %1515 = vmatprep.subr.mxu0 0.0
    %1516 = vmatpush2.msra.mxu0 0.0
    %1517 = vmatprep.subr.mxu0 0.0
    %1518 = vmatpush2.msra.mxu0 0.0
    %1519 = vmatprep.subr.mxu0 0.0
    %1520 = vmatpush2.msra.mxu0 0.0
    %1521 = vmatprep.subr.mxu0 0.0
    %1522 = vmatpush2.msra.mxu0 0.0
    %1523 = vmatprep.subr.mxu0 0.0
    %1524 = vmatpush2.msra.mxu0 0.0
    %1525 = vmatprep.mubr.f32.mxu0 0.0
    %1526 = vmatmul.mubr.f32.gmra.mxu0 %v1456
    %v1527 = vpop.f32.mrf.mxu0
    %v1528 = vadd.f32 0.0, %v1527
    %v1529 = vpop.f32.mrf.mxu0
    %1530 = vmatprep.mubr.f32.mxu0 0.0
    %1531 = vmatmul.mubr.f32.gmra.mxu0 %v1459
    %v1532 = vpop.f32.mrf.mxu0
    %v1533 = vadd.f32 0.0, %v1532
    %v1534 = vpop.f32.mrf.mxu0
    %1535 = vdwg.mxu0
    %1537 = vrot.lane.b32.xlu0 %v42, 32
    %v1538 = vpop.permute.xlu0 %1537
    %v1541 = vsel %vm148, %v916, 0
    %v1544 = vsel %vm148, %v992, 0
    %1546 = vmatprep.subr.mxu0 0.0
    %1547 = vmatpush1.msra.mxu0 0.0
    %1548 = vmatprep.subr.mxu0 0.0
    %1549 = vmatpush1.msra.mxu0 0.0
    %1550 = vmatprep.subr.mxu0 0.0
    %1551 = vmatpush1.msra.mxu0 0.0
    %1552 = vmatprep.subr.mxu0 0.0
    %1553 = vmatpush1.msra.mxu0 0.0
    %1554 = vmatprep.subr.mxu0 0.0
    %1555 = vmatpush1.msra.mxu0 0.0
    %1556 = vmatprep.subr.mxu0 0.0
    %1557 = vmatpush1.msra.mxu0 0.0
    %1558 = vmatprep.subr.mxu0 0.0
    %1559 = vmatpush1.msra.mxu0 0.0
    %1560 = vmatprep.subr.mxu0 0.0
    %1561 = vmatpush1.msra.mxu0 0.0
    %1562 = vmatprep.subr.mxu0 0.0
    %1563 = vmatpush1.msra.mxu0 0.0
    %1564 = vmatprep.subr.mxu0 0.0
    %1565 = vmatpush1.msra.mxu0 0.0
    %1566 = vmatprep.subr.mxu0 0.0
    %1567 = vmatpush1.msra.mxu0 0.0
    %1568 = vmatprep.subr.mxu0 0.0
    %1569 = vmatpush1.msra.mxu0 0.0
    %1570 = vmatprep.subr.mxu0 0.0
    %1571 = vmatpush1.msra.mxu0 0.0
    %1572 = vmatprep.subr.mxu0 0.0
    %1573 = vmatpush1.msra.mxu0 0.0
    %1574 = vmatprep.subr.mxu0 0.0
    %1575 = vmatpush1.msra.mxu0 0.0
    %1576 = vmatprep.subr.mxu0 0.0
    %1577 = vmatpush1.msra.mxu0 %v1538
    %1578 = vmatprep.subr.mxu0 0.0
    %1579 = vmatpush2.msra.mxu0 0.0
    %1580 = vmatprep.subr.mxu0 0.0
    %1581 = vmatpush2.msra.mxu0 0.0
    %1582 = vmatprep.subr.mxu0 0.0
    %1583 = vmatpush2.msra.mxu0 0.0
    %1584 = vmatprep.subr.mxu0 0.0
    %1585 = vmatpush2.msra.mxu0 0.0
    %1586 = vmatprep.subr.mxu0 0.0
    %1587 = vmatpush2.msra.mxu0 0.0
    %1588 = vmatprep.subr.mxu0 0.0
    %1589 = vmatpush2.msra.mxu0 0.0
    %1590 = vmatprep.subr.mxu0 0.0
    %1591 = vmatpush2.msra.mxu0 0.0
    %1592 = vmatprep.subr.mxu0 0.0
    %1593 = vmatpush2.msra.mxu0 0.0
    %1594 = vmatprep.subr.mxu0 0.0
    %1595 = vmatpush2.msra.mxu0 0.0
    %1596 = vmatprep.subr.mxu0 0.0
    %1597 = vmatpush2.msra.mxu0 0.0
    %1598 = vmatprep.subr.mxu0 0.0
    %1599 = vmatpush2.msra.mxu0 0.0
    %1600 = vmatprep.subr.mxu0 0.0
    %1601 = vmatpush2.msra.mxu0 0.0
    %1602 = vmatprep.subr.mxu0 0.0
    %1603 = vmatpush2.msra.mxu0 0.0
    %1604 = vmatprep.subr.mxu0 0.0
    %1605 = vmatpush2.msra.mxu0 0.0
    %1606 = vmatprep.subr.mxu0 0.0
    %1607 = vmatpush2.msra.mxu0 0.0
    %1608 = vmatprep.subr.mxu0 0.0
    %1609 = vmatpush2.msra.mxu0 0.0
    %1610 = vmatprep.mubr.f32.mxu0 0.0
    %1611 = vmatmul.mubr.f32.gmra.mxu0 %v1541
    %v1612 = vpop.f32.mrf.mxu0
    %v1613 = vadd.f32 %v1528, %v1612
    %v1614 = vpop.f32.mrf.mxu0
    %1615 = vmatprep.mubr.f32.mxu0 0.0
    %1616 = vmatmul.mubr.f32.gmra.mxu0 %v1544
    %v1617 = vpop.f32.mrf.mxu0
    %v1618 = vadd.f32 %v1533, %v1617
    %v1619 = vpop.f32.mrf.mxu0
    %1620 = vdwg.mxu0
    %1622 = vrot.lane.b32.xlu0 %v46, 32
    %v1623 = vpop.permute.xlu0 %1622
    %v1626 = vsel %vm148, %v1220, 0
    %v1629 = vsel %vm148, %v1296, 0
    %1631 = vmatprep.subr.mxu0 0.0
    %1632 = vmatpush1.msra.mxu0 0.0
    %1633 = vmatprep.subr.mxu0 0.0
    %1634 = vmatpush1.msra.mxu0 0.0
    %1635 = vmatprep.subr.mxu0 0.0
    %1636 = vmatpush1.msra.mxu0 0.0
    %1637 = vmatprep.subr.mxu0 0.0
    %1638 = vmatpush1.msra.mxu0 0.0
    %1639 = vmatprep.subr.mxu0 0.0
    %1640 = vmatpush1.msra.mxu0 0.0
    %1641 = vmatprep.subr.mxu0 0.0
    %1642 = vmatpush1.msra.mxu0 0.0
    %1643 = vmatprep.subr.mxu0 0.0
    %1644 = vmatpush1.msra.mxu0 0.0
    %1645 = vmatprep.subr.mxu0 0.0
    %1646 = vmatpush1.msra.mxu0 0.0
    %1647 = vmatprep.subr.mxu0 0.0
    %1648 = vmatpush1.msra.mxu0 0.0
    %1649 = vmatprep.subr.mxu0 0.0
    %1650 = vmatpush1.msra.mxu0 0.0
    %1651 = vmatprep.subr.mxu0 0.0
    %1652 = vmatpush1.msra.mxu0 0.0
    %1653 = vmatprep.subr.mxu0 0.0
    %1654 = vmatpush1.msra.mxu0 0.0
    %1655 = vmatprep.subr.mxu0 0.0
    %1656 = vmatpush1.msra.mxu0 0.0
    %1657 = vmatprep.subr.mxu0 0.0
    %1658 = vmatpush1.msra.mxu0 0.0
    %1659 = vmatprep.subr.mxu0 0.0
    %1660 = vmatpush1.msra.mxu0 0.0
    %1661 = vmatprep.subr.mxu0 0.0
    %1662 = vmatpush1.msra.mxu0 %v1623
    %1663 = vmatprep.subr.mxu0 0.0
    %1664 = vmatpush2.msra.mxu0 0.0
    %1665 = vmatprep.subr.mxu0 0.0
    %1666 = vmatpush2.msra.mxu0 0.0
    %1667 = vmatprep.subr.mxu0 0.0
    %1668 = vmatpush2.msra.mxu0 0.0
    %1669 = vmatprep.subr.mxu0 0.0
    %1670 = vmatpush2.msra.mxu0 0.0
    %1671 = vmatprep.subr.mxu0 0.0
    %1672 = vmatpush2.msra.mxu0 0.0
    %1673 = vmatprep.subr.mxu0 0.0
    %1674 = vmatpush2.msra.mxu0 0.0
    %1675 = vmatprep.subr.mxu0 0.0
    %1676 = vmatpush2.msra.mxu0 0.0
    %1677 = vmatprep.subr.mxu0 0.0
    %1678 = vmatpush2.msra.mxu0 0.0
    %1679 = vmatprep.subr.mxu0 0.0
    %1680 = vmatpush2.msra.mxu0 0.0
    %1681 = vmatprep.subr.mxu0 0.0
    %1682 = vmatpush2.msra.mxu0 0.0
    %1683 = vmatprep.subr.mxu0 0.0
    %1684 = vmatpush2.msra.mxu0 0.0
    %1685 = vmatprep.subr.mxu0 0.0
    %1686 = vmatpush2.msra.mxu0 0.0
    %1687 = vmatprep.subr.mxu0 0.0
    %1688 = vmatpush2.msra.mxu0 0.0
    %1689 = vmatprep.subr.mxu0 0.0
    %1690 = vmatpush2.msra.mxu0 0.0
    %1691 = vmatprep.subr.mxu0 0.0
    %1692 = vmatpush2.msra.mxu0 0.0
    %1693 = vmatprep.subr.mxu0 0.0
    %1694 = vmatpush2.msra.mxu0 0.0
    %1695 = vmatprep.mubr.f32.mxu0 0.0
    %1696 = vmatmul.mubr.f32.gmra.mxu0 %v1626
    %v1697 = vpop.f32.mrf.mxu0
    %v1698 = vadd.f32 0.0, %v1697
    %v1699 = vpop.f32.mrf.mxu0
    %1700 = vmatprep.mubr.f32.mxu0 0.0
    %1701 = vmatmul.mubr.f32.gmra.mxu0 %v1629
    %v1702 = vpop.f32.mrf.mxu0
    %v1703 = vadd.f32 0.0, %v1702
    %v1704 = vpop.f32.mrf.mxu0
    %1705 = vdwg.mxu0
    %v1706 = vadd.f32 %v1613, %v1698
    %v1707 = vadd.f32 %v1618, %v1703
    %1709 = vrot.lane.b32.xlu0 %v48, 32
    %v1710 = vpop.permute.xlu0 %1709
    %v1713 = vsel %vm148, %v1372, 0
    %v1716 = vsel %vm148, %v1448, 0
    %1718 = vmatprep.subr.mxu0 0.0
    %1719 = vmatpush1.msra.mxu0 0.0
    %1720 = vmatprep.subr.mxu0 0.0
    %1721 = vmatpush1.msra.mxu0 0.0
    %1722 = vmatprep.subr.mxu0 0.0
    %1723 = vmatpush1.msra.mxu0 0.0
    %1724 = vmatprep.subr.mxu0 0.0
    %1725 = vmatpush1.msra.mxu0 0.0
    %1726 = vmatprep.subr.mxu0 0.0
    %1727 = vmatpush1.msra.mxu0 0.0
    %1728 = vmatprep.subr.mxu0 0.0
    %1729 = vmatpush1.msra.mxu0 0.0
    %1730 = vmatprep.subr.mxu0 0.0
    %1731 = vmatpush1.msra.mxu0 0.0
    %1732 = vmatprep.subr.mxu0 0.0
    %1733 = vmatpush1.msra.mxu0 0.0
    %1734 = vmatprep.subr.mxu0 0.0
    %1735 = vmatpush1.msra.mxu0 0.0
    %1736 = vmatprep.subr.mxu0 0.0
    %1737 = vmatpush1.msra.mxu0 0.0
    %1738 = vmatprep.subr.mxu0 0.0
    %1739 = vmatpush1.msra.mxu0 0.0
    %1740 = vmatprep.subr.mxu0 0.0
    %1741 = vmatpush1.msra.mxu0 0.0
    %1742 = vmatprep.subr.mxu0 0.0
    %1743 = vmatpush1.msra.mxu0 0.0
    %1744 = vmatprep.subr.mxu0 0.0
    %1745 = vmatpush1.msra.mxu0 0.0
    %1746 = vmatprep.subr.mxu0 0.0
    %1747 = vmatpush1.msra.mxu0 0.0
    %1748 = vmatprep.subr.mxu0 0.0
    %1749 = vmatpush1.msra.mxu0 %v1710
    %1750 = vmatprep.subr.mxu0 0.0
    %1751 = vmatpush2.msra.mxu0 0.0
    %1752 = vmatprep.subr.mxu0 0.0
    %1753 = vmatpush2.msra.mxu0 0.0
    %1754 = vmatprep.subr.mxu0 0.0
    %1755 = vmatpush2.msra.mxu0 0.0
    %1756 = vmatprep.subr.mxu0 0.0
    %1757 = vmatpush2.msra.mxu0 0.0
    %1758 = vmatprep.subr.mxu0 0.0
    %1759 = vmatpush2.msra.mxu0 0.0
    %1760 = vmatprep.subr.mxu0 0.0
    %1761 = vmatpush2.msra.mxu0 0.0
    %1762 = vmatprep.subr.mxu0 0.0
    %1763 = vmatpush2.msra.mxu0 0.0
    %1764 = vmatprep.subr.mxu0 0.0
    %1765 = vmatpush2.msra.mxu0 0.0
    %1766 = vmatprep.subr.mxu0 0.0
    %1767 = vmatpush2.msra.mxu0 0.0
    %1768 = vmatprep.subr.mxu0 0.0
    %1769 = vmatpush2.msra.mxu0 0.0
    %1770 = vmatprep.subr.mxu0 0.0
    %1771 = vmatpush2.msra.mxu0 0.0
    %1772 = vmatprep.subr.mxu0 0.0
    %1773 = vmatpush2.msra.mxu0 0.0
    %1774 = vmatprep.subr.mxu0 0.0
    %1775 = vmatpush2.msra.mxu0 0.0
    %1776 = vmatprep.subr.mxu0 0.0
    %1777 = vmatpush2.msra.mxu0 0.0
    %1778 = vmatprep.subr.mxu0 0.0
    %1779 = vmatpush2.msra.mxu0 0.0
    %1780 = vmatprep.subr.mxu0 0.0
    %1781 = vmatpush2.msra.mxu0 0.0
    %1782 = vmatprep.mubr.f32.mxu0 0.0
    %1783 = vmatmul.mubr.f32.gmra.mxu0 %v1713
    %v1784 = vpop.f32.mrf.mxu0
    %v1785 = vadd.f32 0.0, %v1784
    %v1786 = vpop.f32.mrf.mxu0
    %1787 = vmatprep.mubr.f32.mxu0 0.0
    %1788 = vmatmul.mubr.f32.gmra.mxu0 %v1716
    %v1789 = vpop.f32.mrf.mxu0
    %v1790 = vadd.f32 0.0, %v1789
    %v1791 = vpop.f32.mrf.mxu0
    %1792 = vdwg.mxu0
    %v1793 = vadd.f32 %v1706, %v1785
    %v1794 = vadd.f32 %v1707, %v1790
    %v1795 = vadd.f32 %v1793, %v40
    %v1796 = vadd.f32 %v1794, %v41
    %v1797 = vsel %vm50, %v1795, 0.0
    %v1798 = vsel %vm50, %v1796, 0.0
    %v1799 = vadd.f32 %v1797, %v1798
    %1800 = vadd.xlane.f32.xlu0 %v1799
    %v1801 = vpop.xlane.xlu0 %1800
    %v1802 = vrot.slane %v1801, 4
    %v1803 = vadd.f32 %v1801, %v1802
    %v1804 = vrot.slane %v1803, 2
    %v1805 = vadd.f32 %v1803, %v1804
    %v1806 = vrot.slane %v1805, 1
    %v1807 = vadd.f32 %v1805, %v1806
    %s1808 = vtos %v1807
    %v1809 = vmul.f32 %v1795, %v1795
    %v1810 = vmul.f32 %v1796, %v1796
    %v1811 = vsel %vm50, %v1809, 0.0
    %v1812 = vsel %vm50, %v1810, 0.0
    %v1813 = vadd.f32 %v1811, %v1812
    %1814 = vadd.xlane.f32.xlu0 %v1813
    %v1815 = vpop.xlane.xlu0 %1814
    %v1816 = vrot.slane %v1815, 4
    %v1817 = vadd.f32 %v1815, %v1816
    %v1818 = vrot.slane %v1817, 2
    %v1819 = vadd.f32 %v1817, %v1818
    %v1820 = vrot.slane %v1819, 1
    %v1821 = vadd.f32 %v1819, %v1820
    %s1822 = vtos %v1821
    %s1823 = smul.f32 %s1808, 0.001953125
    %s1824 = smul.f32 %s1822, 0.001953125
    %s1825 = smul.f32 %s1823, %s1823
    %s1826 = ssub.f32 %s1824, %s1825
    %v1827 = vstv %s1823
    %v1828 = vsub.f32 %v1795, %v1827
    %v1829 = vsub.f32 %v1796, %v1827
    %s1830 = sadd.f32 %s1826, 1e-05
    %v1831 = vstv %s1830
    %v1832 = vrsqrt.pop %v1831
    %s1833 = vtos %v1832
    %v1834 = vstv %s1833
    %v1835 = vmul.f32 %v1828, %v1834
    %v1836 = vmul.f32 %v1829, %v1834
    %v1838 = vsel %vm50, %v1835, 0
    %v1841 = vsel %vm50, %v1836, 0
    %1843 = vmatprep.subr.mxu0 0.0
    %1844 = vmatpush1.msra.mxu0 0.0
    %1845 = vmatprep.subr.mxu0 0.0
    %1846 = vmatpush1.msra.mxu0 0.0
    %1847 = vmatprep.subr.mxu0 0.0
    %1848 = vmatpush1.msra.mxu0 0.0
    %1849 = vmatprep.subr.mxu0 0.0
    %1850 = vmatpush1.msra.mxu0 0.0
    %1851 = vmatprep.subr.mxu0 0.0
    %1852 = vmatpush1.msra.mxu0 0.0
    %1853 = vmatprep.subr.mxu0 0.0
    %1854 = vmatpush1.msra.mxu0 0.0
    %1855 = vmatprep.subr.mxu0 0.0
    %1856 = vmatpush1.msra.mxu0 0.0
    %1857 = vmatprep.subr.mxu0 0.0
    %1858 = vmatpush1.msra.mxu0 0.0
    %1859 = vmatprep.subr.mxu0 0.0
    %1860 = vmatpush1.msra.mxu0 0.0
    %1861 = vmatprep.subr.mxu0 0.0
    %1862 = vmatpush1.msra.mxu0 0.0
    %1863 = vmatprep.subr.mxu0 0.0
    %1864 = vmatpush1.msra.mxu0 0.0
    %1865 = vmatprep.subr.mxu0 0.0
    %1866 = vmatpush1.msra.mxu0 0.0
    %1867 = vmatprep.subr.mxu0 0.0
    %1868 = vmatpush1.msra.mxu0 %v49
    %1869 = vmatprep.subr.mxu0 0.0
    %1870 = vmatpush1.msra.mxu0 %v47
    %1871 = vmatprep.subr.mxu0 0.0
    %1872 = vmatpush1.msra.mxu0 %v45
    %1873 = vmatprep.subr.mxu0 0.0
    %1874 = vmatpush1.msra.mxu0 %v43
    %1875 = vmatprep.subr.mxu0 0.0
    %1876 = vmatpush2.msra.mxu0 0.0
    %1877 = vmatprep.subr.mxu0 0.0
    %1878 = vmatpush2.msra.mxu0 0.0
    %1879 = vmatprep.subr.mxu0 0.0
    %1880 = vmatpush2.msra.mxu0 0.0
    %1881 = vmatprep.subr.mxu0 0.0
    %1882 = vmatpush2.msra.mxu0 0.0
    %1883 = vmatprep.subr.mxu0 0.0
    %1884 = vmatpush2.msra.mxu0 0.0
    %1885 = vmatprep.subr.mxu0 0.0
    %1886 = vmatpush2.msra.mxu0 0.0
    %1887 = vmatprep.subr.mxu0 0.0
    %1888 = vmatpush2.msra.mxu0 0.0
    %1889 = vmatprep.subr.mxu0 0.0
    %1890 = vmatpush2.msra.mxu0 0.0
    %1891 = vmatprep.subr.mxu0 0.0
    %1892 = vmatpush2.msra.mxu0 0.0
    %1893 = vmatprep.subr.mxu0 0.0
    %1894 = vmatpush2.msra.mxu0 0.0
    %1895 = vmatprep.subr.mxu0 0.0
    %1896 = vmatpush2.msra.mxu0 0.0
    %1897 = vmatprep.subr.mxu0 0.0
    %1898 = vmatpush2.msra.mxu0 0.0
    %1899 = vmatprep.subr.mxu0 0.0
    %1900 = vmatpush2.msra.mxu0 0.0
    %1901 = vmatprep.subr.mxu0 0.0
    %1902 = vmatpush2.msra.mxu0 0.0
    %1903 = vmatprep.subr.mxu0 0.0
    %1904 = vmatpush2.msra.mxu0 0.0
    %1905 = vmatprep.subr.mxu0 0.0
    %1906 = vmatpush2.msra.mxu0 0.0
    %1907 = vmatprep.mubr.f32.mxu0 0.0
    %1908 = vmatmul.mubr.f32.gmra.mxu0 %v1838
    %v1909 = vpop.f32.mrf.mxu0
    %v1910 = vadd.f32 0.0, %v1909
    %v1911 = vpop.f32.mrf.mxu0
    %1912 = vmatprep.mubr.f32.mxu0 0.0
    %1913 = vmatmul.mubr.f32.gmra.mxu0 %v1841
    %v1914 = vpop.f32.mrf.mxu0
    %v1915 = vadd.f32 0.0, %v1914
    %v1916 = vpop.f32.mrf.mxu0
    %1917 = vdwg.mxu0
    %v1918 = vxor.u32 %v1910, 2147483648
    %v1919 = vxor.u32 %v1915, 2147483648
    %v1920 = vmul.f32 %v1918, 1.442695
    %v1921 = vpow.pop %v1920
    %v1922 = vmul.f32 %v1919, 1.442695
    %v1923 = vpow.pop %v1922
    %v1924 = vadd.f32 %v1921, 1.0
    %v1925 = vadd.f32 %v1923, 1.0
    %v1926 = vrcp.pop %v1924
    %v1927 = vmul.f32 1.0, %v1926
    %v1928 = vrcp.pop %v1925
    %v1929 = vmul.f32 1.0, %v1928
    %1934 = vrot.lane.b32.xlu0 %v43, 64
    %v1935 = vpop.permute.xlu0 %1934
    %1936 = vrot.lane.b32.xlu0 %v45, 64
    %v1937 = vpop.permute.xlu0 %1936
    %1938 = vrot.lane.b32.xlu0 %v47, 64
    %v1939 = vpop.permute.xlu0 %1938
    %1940 = vrot.lane.b32.xlu0 %v49, 64
    %v1941 = vpop.permute.xlu0 %1940
    %vm1942 = vcmask 523264
    %v1944 = vsel %vm1942, %v1927, 0
    %v1947 = vsel %vm1942, %v1929, 0
    %v1949 = vsel %vm1942, %v1935, 0
    %v1951 = vsel %vm1942, %v1937, 0
    %v1953 = vsel %vm1942, %v1939, 0
    %v1955 = vsel %vm1942, %v1941, 0
    %1957 = vmatprep.subr.mxu0 0.0
    %1958 = vmatpush1.xpose.msra.mxu0 0.0
    %1959 = vmatprep.subr.mxu0 0.0
    %1960 = vmatpush1.xpose.msra.mxu0 0.0
    %1961 = vmatprep.subr.mxu0 0.0
    %1962 = vmatpush1.xpose.msra.mxu0 0.0
    %1963 = vmatprep.subr.mxu0 0.0
    %1964 = vmatpush1.xpose.msra.mxu0 0.0
    %1965 = vmatprep.subr.mxu0 0.0
    %1966 = vmatpush1.xpose.msra.mxu0 0.0
    %1967 = vmatprep.subr.mxu0 0.0
    %1968 = vmatpush1.xpose.msra.mxu0 0.0
    %1969 = vmatprep.subr.mxu0 0.0
    %1970 = vmatpush1.xpose.msra.mxu0 0.0
    %1971 = vmatprep.subr.mxu0 0.0
    %1972 = vmatpush1.xpose.msra.mxu0 0.0
    %1973 = vmatprep.subr.mxu0 0.0
    %1974 = vmatpush1.xpose.msra.mxu0 0.0
    %1975 = vmatprep.subr.mxu0 0.0
    %1976 = vmatpush1.xpose.msra.mxu0 0.0
    %1977 = vmatprep.subr.mxu0 0.0
    %1978 = vmatpush1.xpose.msra.mxu0 0.0
    %1979 = vmatprep.subr.mxu0 0.0
    %1980 = vmatpush1.xpose.msra.mxu0 0.0
    %1981 = vmatprep.subr.mxu0 0.0
    %1982 = vmatpush1.xpose.msra.mxu0 %v1955
    %1983 = vmatprep.subr.mxu0 0.0
    %1984 = vmatpush1.xpose.msra.mxu0 %v1953
    %1985 = vmatprep.subr.mxu0 0.0
    %1986 = vmatpush1.xpose.msra.mxu0 %v1951
    %1987 = vmatprep.subr.mxu0 0.0
    %1988 = vmatpush1.xpose.msra.mxu0 %v1949
    %1989 = vmatprep.subr.mxu0 0.0
    %1990 = vmatpush2.xpose.msra.mxu0 0.0
    %1991 = vmatprep.subr.mxu0 0.0
    %1992 = vmatpush2.xpose.msra.mxu0 0.0
    %1993 = vmatprep.subr.mxu0 0.0
    %1994 = vmatpush2.xpose.msra.mxu0 0.0
    %1995 = vmatprep.subr.mxu0 0.0
    %1996 = vmatpush2.xpose.msra.mxu0 0.0
    %1997 = vmatprep.subr.mxu0 0.0
    %1998 = vmatpush2.xpose.msra.mxu0 0.0
    %1999 = vmatprep.subr.mxu0 0.0
    %2000 = vmatpush2.xpose.msra.mxu0 0.0
    %2001 = vmatprep.subr.mxu0 0.0
    %2002 = vmatpush2.xpose.msra.mxu0 0.0
    %2003 = vmatprep.subr.mxu0 0.0
    %2004 = vmatpush2.xpose.msra.mxu0 0.0
    %2005 = vmatprep.subr.mxu0 0.0
    %2006 = vmatpush2.xpose.msra.mxu0 0.0
    %2007 = vmatprep.subr.mxu0 0.0
    %2008 = vmatpush2.xpose.msra.mxu0 0.0
    %2009 = vmatprep.subr.mxu0 0.0
    %2010 = vmatpush2.xpose.msra.mxu0 0.0
    %2011 = vmatprep.subr.mxu0 0.0
    %2012 = vmatpush2.xpose.msra.mxu0 0.0
    %2013 = vmatprep.subr.mxu0 0.0
    %2014 = vmatpush2.xpose.msra.mxu0 0.0
    %2015 = vmatprep.subr.mxu0 0.0
    %2016 = vmatpush2.xpose.msra.mxu0 0.0
    %2017 = vmatprep.subr.mxu0 0.0
    %2018 = vmatpush2.xpose.msra.mxu0 0.0
    %2019 = vmatprep.subr.mxu0 0.0
    %2020 = vmatpush2.xpose.msra.mxu0 0.0
    %2021 = vmatprep.mubr.f32.mxu0 0.0
    %2022 = vmatmul.mubr.f32.gmra.mxu0 %v1944
    %v2023 = vpop.f32.mrf.mxu0
    %v2024 = vadd.f32 %v1835, %v2023
    %v2025 = vpop.f32.mrf.mxu0
    %2026 = vmatprep.mubr.f32.mxu0 0.0
    %2027 = vmatmul.mubr.f32.gmra.mxu0 %v1947
    %v2028 = vpop.f32.mrf.mxu0
    %v2029 = vadd.f32 %v1836, %v2028
    %v2030 = vpop.f32.mrf.mxu0
    %2031 = vdwg.mxu0
    %v2032 = vsel %vm50, %v2024, 0.0
    %v2033 = vsel %vm50, %v2029, 0.0
    %v2034 = vadd.f32 %v2032, %v2033
    %2035 = vadd.xlane.f32.xlu0 %v2034
    %v2036 = vpop.xlane.xlu0 %2035
    %v2037 = vrot.slane %v2036, 4
    %v2038 = vadd.f32 %v2036, %v2037
    %v2039 = vrot.slane %v2038, 2
    %v2040 = vadd.f32 %v2038, %v2039
    %v2041 = vrot.slane %v2040, 1
    %v2042 = vadd.f32 %v2040, %v2041
    %s2043 = vtos %v2042
    %v2044 = vmul.f32 %v2024, %v2024
    %v2045 = vmul.f32 %v2029, %v2029
    %v2046 = vsel %vm50, %v2044, 0.0
    %v2047 = vsel %vm50, %v2045, 0.0
    %v2048 = vadd.f32 %v2046, %v2047
    %2049 = vadd.xlane.f32.xlu0 %v2048
    %v2050 = vpop.xlane.xlu0 %2049
    %v2051 = vrot.slane %v2050, 4
    %v2052 = vadd.f32 %v2050, %v2051
    %v2053 = vrot.slane %v2052, 2
    %v2054 = vadd.f32 %v2052, %v2053
    %v2055 = vrot.slane %v2054, 1
    %v2056 = vadd.f32 %v2054, %v2055
    %s2057 = vtos %v2056
    %s2058 = smul.f32 %s2043, 0.001953125
    %s2059 = smul.f32 %s2057, 0.001953125
    %s2060 = smul.f32 %s2058, %s2058
    %s2061 = ssub.f32 %s2059, %s2060
    %v2062 = vstv %s2058
    %v2063 = vsub.f32 %v2024, %v2062
    %v2064 = vsub.f32 %v2029, %v2062
    %s2065 = sadd.f32 %s2061, 1e-05
    %v2066 = vstv %s2065
    %v2067 = vrsqrt.pop %v2066
    %s2068 = vtos %v2067
    %v2069 = vstv %s2068
    %v2070 = vmul.f32 %v2063, %v2069
    %v2071 = vmul.f32 %v2064, %v2069
    %2072 = vst.msk [vmem:[#allocation7] sm:$0xff] %vm50, %v2070
    %2073 = vst.msk [vmem:[#allocation7 + $0x8] sm:$0xff] %vm50, %v2071
    // Predicated region
    $region18: #{encoder_forward.1} parent=1 // pred_check
      _
    $region19: #{encoder_forward.1} parent=1 // pred_check_branch
      %2075 = sbr.rel (0) target = $region21
    $region20: #{encoder_forward.1} parent=1 // pred_region
      %s2077 = ssub.s32 256, 256
      %2078 = vsyncadd [#allocation4], %s2077
      %s2079 = sshll.u32 [#allocation7], 4
      %s2080 = int_to_ptr.vmem [resolvable:$true] %s2079
      %2085 = dma.vmem_to_hbm [thread:$0]  %s2080, 256, %s2, [#allocation4], 128, 128, 8
    $region21: #{encoder_forward.1} parent=1 // pred_fallthru
      _
    // Predicated region
    $region22: #{encoder_forward.1} parent=1 // pred_check
      _
    $region23: #{encoder_forward.1} parent=1 // pred_check_branch
      %2087 = sbr.rel (0) target = $region25
    $region24: #{encoder_forward.1} parent=1 // pred_region
      %2088 = dma.done [#allocation4], 256
    $region25: #{encoder_forward.1} parent=1 // pred_fallthru
      _
    %2089 = vsyncpa [#allocation3], 1
    %2090 = vsyncpa [#allocation6], 1
    %2091 = vsyncpa [#allocation4], 1

</llo_original>
